<compile_context>
chip_gen: v6e
topology: v6e:2x2x1
jax: 0.10.0
libtpu: 0.0.40
codegen_flags: <defaults>
</compile_context>

<pallas_src>
import jax
import jax.numpy as jnp
from jax.experimental import pallas as pl
from jax.experimental.pallas import tpu as pltpu


# ----------------------------------------------------------------------------
# Fused kernel: all LSTM layers, all time steps, and the FC head.
# Inputs (whole arrays resident in VMEM — everything is tiny):
#   x_ref                 : (T*B, I)   time-major flattened input (row = t*B+b)
#   per layer l           : w_ih_t (I_l, 4H), w_hh_t (H, 4H), bias (1, 4H)
#   fcw_ref               : (2*L*H, O) fc1 weight, pre-transposed
#   fcb_ref               : (1, O)
# Output:
#   out_ref               : (B, O)
# Scratch:
#   hv_scr                : (B, L*H)   raw-view assembly buffer
# ----------------------------------------------------------------------------
def _make_fused_kernel(L, T, B, I, H, O):
    LH = L * H

    def kernel(*args):
        x_ref = args[0]
        w_refs = args[1:1 + 3 * L]
        fcw_ref = args[1 + 3 * L]
        fcb_ref = args[2 + 3 * L]
        out_ref = args[3 + 3 * L]
        hv_scr = args[4 + 3 * L]

        # Load all weights once (tiny, live in vregs).
        w_ih = [w_refs[3 * l][...] for l in range(L)]        # (I_l, 4H)
        w_hh = [w_refs[3 * l + 1][...] for l in range(L)]     # (H, 4H)
        bias = [w_refs[3 * l + 2][...] for l in range(L)]     # (1, 4H)

        # Layer 0: one batched input projection over every time step
        # (bias folded in).  Shape (T*B, 4H), rows are t-major.
        proj0 = jnp.dot(x_ref[...], w_ih[0],
                        preferred_element_type=jnp.float32) + bias[0]

        h = [jnp.zeros((B, H), jnp.float32) for _ in range(L)]
        c = [jnp.zeros((B, H), jnp.float32) for _ in range(L)]

        def lstm_cell(pre, h_prev, c_prev, w_hh_l):
            # pre already contains x_t @ W_ih + b
            g = pre + jnp.dot(h_prev, w_hh_l,
                              preferred_element_type=jnp.float32)   # (B, 4H)
            sg = jax.nn.sigmoid(g)          # one EUP pass over all gates
            th = jnp.tanh(g)
            i_g = sg[:, 0 * H:1 * H]
            f_g = sg[:, 1 * H:2 * H]
            g_g = th[:, 2 * H:3 * H]
            o_g = sg[:, 3 * H:4 * H]
            c_new = f_g * c_prev + i_g * g_g
            h_new = o_g * jnp.tanh(c_new)
            return h_new, c_new

        # Wavefront: t outer, layer inner — layer l step t only needs
        # layer l-1 step t and layer l step t-1.  Fully unrolled (T, L small).
        for t in range(T):
            for l in range(L):
                if l == 0:
                    pre = proj0[t * B:(t + 1) * B, :]
                else:
                    pre = jnp.dot(h[l - 1], w_ih[l],
                                  preferred_element_type=jnp.float32) + bias[l]
                h[l], c[l] = lstm_cell(pre, h[l], c[l], w_hh[l])

        # Replicate torch's raw (L, B, H) -> (B, L*H) .view() of h_n exactly
        # (it interleaves layers and batches; each (l, b) h-vector lands in one
        #  contiguous H-wide slot of the (B, L*H) view — never crosses a row).
        for l in range(L):
            for b in range(B):
                flat0 = l * B * H + b * H
                r, col = flat0 // LH, flat0 % LH
                hv_scr[r:r + 1, col:col + H] = h[l][b:b + 1, :]
        hv = hv_scr[...]                            # (B, L*H)

        # cat(hidden, hidden) @ W  ==  hidden @ (W_top + W_bot)
        fcw = fcw_ref[...]
        w_fold = fcw[0:LH, :] + fcw[LH:2 * LH, :]   # (L*H, O)
        out_ref[...] = jnp.dot(hv, w_fold,
                               preferred_element_type=jnp.float32) + fcb_ref[...]

    return kernel


# ----------------------------------------------------------------------------
# Full forward pass (mirrors ParameterEstimator.forward, bug included)
# ----------------------------------------------------------------------------
def parameter_estimator_forward(x, lstm_params, fc_w_t, fc_b):
    x = x.astype(jnp.float32)
    B, T, I = x.shape
    L = len(lstm_params)
    H = lstm_params[0][1].shape[0]
    O = fc_w_t.shape[1]

    # time-major, flattened so the kernel does only 2-D matmuls / row slices
    x_flat = jnp.transpose(x, (1, 0, 2)).reshape(T * B, I)

    inputs = [x_flat]
    for (w_ih_t, w_hh_t, b) in lstm_params:
        inputs += [w_ih_t, w_hh_t, b]
    inputs += [fc_w_t, fc_b]

    kernel = _make_fused_kernel(L, T, B, I, H, O)
    fout = pl.pallas_call(
        kernel,
        out_shape=jax.ShapeDtypeStruct((B, O), jnp.float32),
        in_specs=[pl.BlockSpec(memory_space=pltpu.MemorySpace.VMEM)] * len(inputs),
        out_specs=pl.BlockSpec(memory_space=pltpu.MemorySpace.VMEM),
        scratch_shapes=[pltpu.VMEM((B, L * H), jnp.float32)],
    )(*inputs)
    return fout.reshape(-1, O)                       # torch's final .view()


# ----------------------------------------------------------------------------
# Pure-JAX reference (for verification; replicates the same PyTorch bug)
# ----------------------------------------------------------------------------
def _reference_forward(x, lstm_params, fc_w_t, fc_b):
    x = x.astype(jnp.float32)
    B, T, _ = x.shape
    seq = x
    h_list = []
    for (w_ih_t, w_hh_t, b) in lstm_params:
        H = w_hh_t.shape[0]
        h = jnp.zeros((B, H), jnp.float32)
        c = jnp.zeros((B, H), jnp.float32)
        outs = []
        for t in range(T):
            gates = seq[:, t, :] @ w_ih_t + h @ w_hh_t + b
            i_g = jax.nn.sigmoid(gates[:, :H])
            f_g = jax.nn.sigmoid(gates[:, H:2 * H])
            g_g = jnp.tanh(gates[:, 2 * H:3 * H])
            o_g = jax.nn.sigmoid(gates[:, 3 * H:])
            c = f_g * c + i_g * g_g
            h = o_g * jnp.tanh(c)
            outs.append(h)
        seq = jnp.stack(outs, axis=1)
        h_list.append(h)
    h_n = jnp.stack(h_list, axis=0)
    L, _, H = h_n.shape
    hv = jnp.reshape(h_n, (B, L * H))                # raw view, mixes layers/batches
    out = jnp.concatenate([hv, hv], axis=1)
    return out @ fc_w_t + fc_b


# ----------------------------------------------------------------------------
# Deterministic parameter construction (PyTorch-style shapes / init ranges)
# ----------------------------------------------------------------------------
def make_params(key, input_neurons, hidden_dim, num_lstms, output_neurons):
    H = hidden_dim
    lstm_params = []
    scale = 1.0 / jnp.sqrt(jnp.float32(H))
    for l in range(num_lstms):
        in_l = input_neurons if l == 0 else H
        key, k1, k2, k3, k4 = jax.random.split(key, 5)
        w_ih = jax.random.uniform(k1, (4 * H, in_l), jnp.float32, -scale, scale)
        w_hh = jax.random.uniform(k2, (4 * H, H), jnp.float32, -scale, scale)
        b_ih = jax.random.uniform(k3, (4 * H,), jnp.float32, -scale, scale)
        b_hh = jax.random.uniform(k4, (4 * H,), jnp.float32, -scale, scale)
        # pre-transpose for the kernel, fold the two biases together
        lstm_params.append((w_ih.T, w_hh.T, (b_ih + b_hh).reshape(1, 4 * H)))
    fc_in = hidden_dim * num_lstms * 2
    key, k1, k2 = jax.random.split(key, 3)
    fscale = 1.0 / jnp.sqrt(jnp.float32(fc_in))
    fc_w = jax.random.uniform(k1, (output_neurons, fc_in), jnp.float32, -fscale, fscale)
    fc_b = jax.random.uniform(k2, (output_neurons,), jnp.float32, -fscale, fscale)
    return lstm_params, fc_w.T, fc_b.reshape(1, output_neurons)


if __name__ == "__main__":
    # module hyper-params
    sequence_length = 8
    hidden_dim = 32
    batch_size = 2
    num_lstms = 2
    input_neurons = 4
    output_neurons = 3

    key = jax.random.PRNGKey(0)
    kx, kp = jax.random.split(key)
    x = jax.random.normal(kx, (batch_size, sequence_length, input_neurons),
                          dtype=jnp.float32)
    lstm_params, fc_w_t, fc_b = make_params(
        kp, input_neurons, hidden_dim, num_lstms, output_neurons)

    fwd = jax.jit(parameter_estimator_forward)
    fout = fwd(x, lstm_params, fc_w_t, fc_b)
    fout = jax.block_until_ready(fout)

    ref = _reference_forward(x, lstm_params, fc_w_t, fc_b)
    assert fout.shape == (batch_size, output_neurons), fout.shape
    assert jnp.allclose(fout, ref, rtol=1e-4, atol=1e-4), (fout, ref)

    print("KERNEL_OK")
</pallas_src>

<mosaic_0001>
module attributes {stable_mosaic.version = 11 : i64} {
  func.func @kernel(%arg0: memref<16x4xf32, #tpu.memory_space<vmem>>, %arg1: memref<4x128xf32, #tpu.memory_space<vmem>>, %arg2: memref<32x128xf32, #tpu.memory_space<vmem>>, %arg3: memref<1x128xf32, #tpu.memory_space<vmem>>, %arg4: memref<32x128xf32, #tpu.memory_space<vmem>>, %arg5: memref<32x128xf32, #tpu.memory_space<vmem>>, %arg6: memref<1x128xf32, #tpu.memory_space<vmem>>, %arg7: memref<128x3xf32, #tpu.memory_space<vmem>>, %arg8: memref<1x3xf32, #tpu.memory_space<vmem>>, %arg9: memref<2x3xf32, #tpu.memory_space<vmem>>, %arg10: memref<2x64xf32, #tpu.memory_space<vmem>>) attributes {dimension_semantics = [], scalar_prefetch = 0 : i64, scratch_operands = 1 : i64, tpu.core_type = #tpu.core_type<tc>} {
    %c0 = arith.constant 0 : index
    %c0_0 = arith.constant 0 : index
    %0 = vector.load %arg1[%c0, %c0_0] : memref<4x128xf32, #tpu.memory_space<vmem>>, vector<4x128xf32>
    %c0_1 = arith.constant 0 : index
    %c0_2 = arith.constant 0 : index
    %1 = vector.load %arg4[%c0_1, %c0_2] : memref<32x128xf32, #tpu.memory_space<vmem>>, vector<32x128xf32>
    %c0_3 = arith.constant 0 : index
    %c0_4 = arith.constant 0 : index
    %2 = vector.load %arg2[%c0_3, %c0_4] : memref<32x128xf32, #tpu.memory_space<vmem>>, vector<32x128xf32>
    %c0_5 = arith.constant 0 : index
    %c0_6 = arith.constant 0 : index
    %3 = vector.load %arg5[%c0_5, %c0_6] : memref<32x128xf32, #tpu.memory_space<vmem>>, vector<32x128xf32>
    %c0_7 = arith.constant 0 : index
    %c0_8 = arith.constant 0 : index
    %4 = vector.load %arg3[%c0_7, %c0_8] : memref<1x128xf32, #tpu.memory_space<vmem>>, vector<1x128xf32>
    %c0_9 = arith.constant 0 : index
    %c0_10 = arith.constant 0 : index
    %5 = vector.load %arg6[%c0_9, %c0_10] : memref<1x128xf32, #tpu.memory_space<vmem>>, vector<1x128xf32>
    %c0_11 = arith.constant 0 : index
    %c0_12 = arith.constant 0 : index
    %6 = vector.load %arg0[%c0_11, %c0_12] : memref<16x4xf32, #tpu.memory_space<vmem>>, vector<16x4xf32>
    %cst = arith.constant dense<0.000000e+00> : vector<16x128xf32>
    %7 = tpu.matmul %6, %0, %cst {dimension_numbers = #tpu.dot_dimension_numbers<[1], [0], [0], [1], [0, 0, 1, 1], [], []>} : vector<16x4xf32>, vector<4x128xf32>, vector<16x128xf32> -> vector<16x128xf32>
    %8 = vector.broadcast %4 : vector<1x128xf32> to vector<16x128xf32>
    %9 = arith.addf %7, %8 : vector<16x128xf32>
    %cst_13 = arith.constant 0.000000e+00 : f32
    %10 = vector.broadcast %cst_13 : f32 to vector<2x32xf32>
    %cst_14 = arith.constant 0.000000e+00 : f32
    %11 = vector.broadcast %cst_14 : f32 to vector<2x32xf32>
    %cst_15 = arith.constant 0.000000e+00 : f32
    %12 = vector.broadcast %cst_15 : f32 to vector<2x32xf32>
    %cst_16 = arith.constant 0.000000e+00 : f32
    %13 = vector.broadcast %cst_16 : f32 to vector<2x32xf32>
    %14 = vector.extract_strided_slice %9 {offsets = [0, 0], sizes = [2, 128], strides = [1, 1]} : vector<16x128xf32> to vector<2x128xf32>
    %cst_17 = arith.constant dense<0.000000e+00> : vector<2x128xf32>
    %15 = tpu.matmul %10, %2, %cst_17 {dimension_numbers = #tpu.dot_dimension_numbers<[1], [0], [0], [1], [0, 0, 1, 1], [], []>} : vector<2x32xf32>, vector<32x128xf32>, vector<2x128xf32> -> vector<2x128xf32>
    %16 = arith.addf %14, %15 : vector<2x128xf32>
    %17 = arith.negf %16 : vector<2x128xf32>
    %18 = math.exp %17 : vector<2x128xf32>
    %cst_18 = arith.constant 1.000000e+00 : f32
    %19 = vector.broadcast %cst_18 : f32 to vector<2x128xf32>
    %20 = arith.addf %19, %18 : vector<2x128xf32>
    %21 = arith.divf %19, %20 : vector<2x128xf32>
    %22 = math.tanh %16 : vector<2x128xf32>
    %23 = vector.extract_strided_slice %21 {offsets = [0, 0], sizes = [2, 32], strides = [1, 1]} : vector<2x128xf32> to vector<2x32xf32>
    %24 = vector.extract_strided_slice %21 {offsets = [0, 32], sizes = [2, 32], strides = [1, 1]} : vector<2x128xf32> to vector<2x32xf32>
    %25 = vector.extract_strided_slice %22 {offsets = [0, 64], sizes = [2, 32], strides = [1, 1]} : vector<2x128xf32> to vector<2x32xf32>
    %26 = vector.extract_strided_slice %21 {offsets = [0, 96], sizes = [2, 32], strides = [1, 1]} : vector<2x128xf32> to vector<2x32xf32>
    %27 = arith.mulf %24, %12 : vector<2x32xf32>
    %28 = arith.mulf %23, %25 : vector<2x32xf32>
    %29 = arith.addf %27, %28 : vector<2x32xf32>
    %30 = math.tanh %29 : vector<2x32xf32>
    %31 = arith.mulf %26, %30 : vector<2x32xf32>
    %cst_19 = arith.constant dense<0.000000e+00> : vector<2x128xf32>
    %32 = tpu.matmul %31, %1, %cst_19 {dimension_numbers = #tpu.dot_dimension_numbers<[1], [0], [0], [1], [0, 0, 1, 1], [], []>} : vector<2x32xf32>, vector<32x128xf32>, vector<2x128xf32> -> vector<2x128xf32>
    %33 = vector.broadcast %5 : vector<1x128xf32> to vector<2x128xf32>
    %34 = arith.addf %32, %33 : vector<2x128xf32>
    %cst_20 = arith.constant dense<0.000000e+00> : vector<2x128xf32>
    %35 = tpu.matmul %11, %3, %cst_20 {dimension_numbers = #tpu.dot_dimension_numbers<[1], [0], [0], [1], [0, 0, 1, 1], [], []>} : vector<2x32xf32>, vector<32x128xf32>, vector<2x128xf32> -> vector<2x128xf32>
    %36 = arith.addf %34, %35 : vector<2x128xf32>
    %37 = arith.negf %36 : vector<2x128xf32>
    %38 = math.exp %37 : vector<2x128xf32>
    %cst_21 = arith.constant 1.000000e+00 : f32
    %39 = vector.broadcast %cst_21 : f32 to vector<2x128xf32>
    %40 = arith.addf %39, %38 : vector<2x128xf32>
    %41 = arith.divf %39, %40 : vector<2x128xf32>
    %42 = math.tanh %36 : vector<2x128xf32>
    %43 = vector.extract_strided_slice %41 {offsets = [0, 0], sizes = [2, 32], strides = [1, 1]} : vector<2x128xf32> to vector<2x32xf32>
    %44 = vector.extract_strided_slice %41 {offsets = [0, 32], sizes = [2, 32], strides = [1, 1]} : vector<2x128xf32> to vector<2x32xf32>
    %45 = vector.extract_strided_slice %42 {offsets = [0, 64], sizes = [2, 32], strides = [1, 1]} : vector<2x128xf32> to vector<2x32xf32>
    %46 = vector.extract_strided_slice %41 {offsets = [0, 96], sizes = [2, 32], strides = [1, 1]} : vector<2x128xf32> to vector<2x32xf32>
    %47 = arith.mulf %44, %13 : vector<2x32xf32>
    %48 = arith.mulf %43, %45 : vector<2x32xf32>
    %49 = arith.addf %47, %48 : vector<2x32xf32>
    %50 = math.tanh %49 : vector<2x32xf32>
    %51 = arith.mulf %46, %50 : vector<2x32xf32>
    %52 = vector.extract_strided_slice %9 {offsets = [2, 0], sizes = [2, 128], strides = [1, 1]} : vector<16x128xf32> to vector<2x128xf32>
    %cst_22 = arith.constant dense<0.000000e+00> : vector<2x128xf32>
    %53 = tpu.matmul %31, %2, %cst_22 {dimension_numbers = #tpu.dot_dimension_numbers<[1], [0], [0], [1], [0, 0, 1, 1], [], []>} : vector<2x32xf32>, vector<32x128xf32>, vector<2x128xf32> -> vector<2x128xf32>
    %54 = arith.addf %52, %53 : vector<2x128xf32>
    %55 = arith.negf %54 : vector<2x128xf32>
    %56 = math.exp %55 : vector<2x128xf32>
    %cst_23 = arith.constant 1.000000e+00 : f32
    %57 = vector.broadcast %cst_23 : f32 to vector<2x128xf32>
    %58 = arith.addf %57, %56 : vector<2x128xf32>
    %59 = arith.divf %57, %58 : vector<2x128xf32>
    %60 = math.tanh %54 : vector<2x128xf32>
    %61 = vector.extract_strided_slice %59 {offsets = [0, 0], sizes = [2, 32], strides = [1, 1]} : vector<2x128xf32> to vector<2x32xf32>
    %62 = vector.extract_strided_slice %59 {offsets = [0, 32], sizes = [2, 32], strides = [1, 1]} : vector<2x128xf32> to vector<2x32xf32>
    %63 = vector.extract_strided_slice %60 {offsets = [0, 64], sizes = [2, 32], strides = [1, 1]} : vector<2x128xf32> to vector<2x32xf32>
    %64 = vector.extract_strided_slice %59 {offsets = [0, 96], sizes = [2, 32], strides = [1, 1]} : vector<2x128xf32> to vector<2x32xf32>
    %65 = arith.mulf %62, %29 : vector<2x32xf32>
    %66 = arith.mulf %61, %63 : vector<2x32xf32>
    %67 = arith.addf %65, %66 : vector<2x32xf32>
    %68 = math.tanh %67 : vector<2x32xf32>
    %69 = arith.mulf %64, %68 : vector<2x32xf32>
    %cst_24 = arith.constant dense<0.000000e+00> : vector<2x128xf32>
    %70 = tpu.matmul %69, %1, %cst_24 {dimension_numbers = #tpu.dot_dimension_numbers<[1], [0], [0], [1], [0, 0, 1, 1], [], []>} : vector<2x32xf32>, vector<32x128xf32>, vector<2x128xf32> -> vector<2x128xf32>
    %71 = vector.broadcast %5 : vector<1x128xf32> to vector<2x128xf32>
    %72 = arith.addf %70, %71 : vector<2x128xf32>
    %cst_25 = arith.constant dense<0.000000e+00> : vector<2x128xf32>
    %73 = tpu.matmul %51, %3, %cst_25 {dimension_numbers = #tpu.dot_dimension_numbers<[1], [0], [0], [1], [0, 0, 1, 1], [], []>} : vector<2x32xf32>, vector<32x128xf32>, vector<2x128xf32> -> vector<2x128xf32>
    %74 = arith.addf %72, %73 : vector<2x128xf32>
    %75 = arith.negf %74 : vector<2x128xf32>
    %76 = math.exp %75 : vector<2x128xf32>
    %cst_26 = arith.constant 1.000000e+00 : f32
    %77 = vector.broadcast %cst_26 : f32 to vector<2x128xf32>
    %78 = arith.addf %77, %76 : vector<2x128xf32>
    %79 = arith.divf %77, %78 : vector<2x128xf32>
    %80 = math.tanh %74 : vector<2x128xf32>
    %81 = vector.extract_strided_slice %79 {offsets = [0, 0], sizes = [2, 32], strides = [1, 1]} : vector<2x128xf32> to vector<2x32xf32>
    %82 = vector.extract_strided_slice %79 {offsets = [0, 32], sizes = [2, 32], strides = [1, 1]} : vector<2x128xf32> to vector<2x32xf32>
    %83 = vector.extract_strided_slice %80 {offsets = [0, 64], sizes = [2, 32], strides = [1, 1]} : vector<2x128xf32> to vector<2x32xf32>
    %84 = vector.extract_strided_slice %79 {offsets = [0, 96], sizes = [2, 32], strides = [1, 1]} : vector<2x128xf32> to vector<2x32xf32>
    %85 = arith.mulf %82, %49 : vector<2x32xf32>
    %86 = arith.mulf %81, %83 : vector<2x32xf32>
    %87 = arith.addf %85, %86 : vector<2x32xf32>
    %88 = math.tanh %87 : vector<2x32xf32>
    %89 = arith.mulf %84, %88 : vector<2x32xf32>
    %90 = vector.extract_strided_slice %9 {offsets = [4, 0], sizes = [2, 128], strides = [1, 1]} : vector<16x128xf32> to vector<2x128xf32>
    %cst_27 = arith.constant dense<0.000000e+00> : vector<2x128xf32>
    %91 = tpu.matmul %69, %2, %cst_27 {dimension_numbers = #tpu.dot_dimension_numbers<[1], [0], [0], [1], [0, 0, 1, 1], [], []>} : vector<2x32xf32>, vector<32x128xf32>, vector<2x128xf32> -> vector<2x128xf32>
    %92 = arith.addf %90, %91 : vector<2x128xf32>
    %93 = arith.negf %92 : vector<2x128xf32>
    %94 = math.exp %93 : vector<2x128xf32>
    %cst_28 = arith.constant 1.000000e+00 : f32
    %95 = vector.broadcast %cst_28 : f32 to vector<2x128xf32>
    %96 = arith.addf %95, %94 : vector<2x128xf32>
    %97 = arith.divf %95, %96 : vector<2x128xf32>
    %98 = math.tanh %92 : vector<2x128xf32>
    %99 = vector.extract_strided_slice %97 {offsets = [0, 0], sizes = [2, 32], strides = [1, 1]} : vector<2x128xf32> to vector<2x32xf32>
    %100 = vector.extract_strided_slice %97 {offsets = [0, 32], sizes = [2, 32], strides = [1, 1]} : vector<2x128xf32> to vector<2x32xf32>
    %101 = vector.extract_strided_slice %98 {offsets = [0, 64], sizes = [2, 32], strides = [1, 1]} : vector<2x128xf32> to vector<2x32xf32>
    %102 = vector.extract_strided_slice %97 {offsets = [0, 96], sizes = [2, 32], strides = [1, 1]} : vector<2x128xf32> to vector<2x32xf32>
    %103 = arith.mulf %100, %67 : vector<2x32xf32>
    %104 = arith.mulf %99, %101 : vector<2x32xf32>
    %105 = arith.addf %103, %104 : vector<2x32xf32>
    %106 = math.tanh %105 : vector<2x32xf32>
    %107 = arith.mulf %102, %106 : vector<2x32xf32>
    %cst_29 = arith.constant dense<0.000000e+00> : vector<2x128xf32>
    %108 = tpu.matmul %107, %1, %cst_29 {dimension_numbers = #tpu.dot_dimension_numbers<[1], [0], [0], [1], [0, 0, 1, 1], [], []>} : vector<2x32xf32>, vector<32x128xf32>, vector<2x128xf32> -> vector<2x128xf32>
    %109 = vector.broadcast %5 : vector<1x128xf32> to vector<2x128xf32>
    %110 = arith.addf %108, %109 : vector<2x128xf32>
    %cst_30 = arith.constant dense<0.000000e+00> : vector<2x128xf32>
    %111 = tpu.matmul %89, %3, %cst_30 {dimension_numbers = #tpu.dot_dimension_numbers<[1], [0], [0], [1], [0, 0, 1, 1], [], []>} : vector<2x32xf32>, vector<32x128xf32>, vector<2x128xf32> -> vector<2x128xf32>
    %112 = arith.addf %110, %111 : vector<2x128xf32>
    %113 = arith.negf %112 : vector<2x128xf32>
    %114 = math.exp %113 : vector<2x128xf32>
    %cst_31 = arith.constant 1.000000e+00 : f32
    %115 = vector.broadcast %cst_31 : f32 to vector<2x128xf32>
    %116 = arith.addf %115, %114 : vector<2x128xf32>
    %117 = arith.divf %115, %116 : vector<2x128xf32>
    %118 = math.tanh %112 : vector<2x128xf32>
    %119 = vector.extract_strided_slice %117 {offsets = [0, 0], sizes = [2, 32], strides = [1, 1]} : vector<2x128xf32> to vector<2x32xf32>
    %120 = vector.extract_strided_slice %117 {offsets = [0, 32], sizes = [2, 32], strides = [1, 1]} : vector<2x128xf32> to vector<2x32xf32>
    %121 = vector.extract_strided_slice %118 {offsets = [0, 64], sizes = [2, 32], strides = [1, 1]} : vector<2x128xf32> to vector<2x32xf32>
    %122 = vector.extract_strided_slice %117 {offsets = [0, 96], sizes = [2, 32], strides = [1, 1]} : vector<2x128xf32> to vector<2x32xf32>
    %123 = arith.mulf %120, %87 : vector<2x32xf32>
    %124 = arith.mulf %119, %121 : vector<2x32xf32>
    %125 = arith.addf %123, %124 : vector<2x32xf32>
    %126 = math.tanh %125 : vector<2x32xf32>
    %127 = arith.mulf %122, %126 : vector<2x32xf32>
    %128 = vector.extract_strided_slice %9 {offsets = [6, 0], sizes = [2, 128], strides = [1, 1]} : vector<16x128xf32> to vector<2x128xf32>
    %cst_32 = arith.constant dense<0.000000e+00> : vector<2x128xf32>
    %129 = tpu.matmul %107, %2, %cst_32 {dimension_numbers = #tpu.dot_dimension_numbers<[1], [0], [0], [1], [0, 0, 1, 1], [], []>} : vector<2x32xf32>, vector<32x128xf32>, vector<2x128xf32> -> vector<2x128xf32>
    %130 = arith.addf %128, %129 : vector<2x128xf32>
    %131 = arith.negf %130 : vector<2x128xf32>
    %132 = math.exp %131 : vector<2x128xf32>
    %cst_33 = arith.constant 1.000000e+00 : f32
    %133 = vector.broadcast %cst_33 : f32 to vector<2x128xf32>
    %134 = arith.addf %133, %132 : vector<2x128xf32>
    %135 = arith.divf %133, %134 : vector<2x128xf32>
    %136 = math.tanh %130 : vector<2x128xf32>
    %137 = vector.extract_strided_slice %135 {offsets = [0, 0], sizes = [2, 32], strides = [1, 1]} : vector<2x128xf32> to vector<2x32xf32>
    %138 = vector.extract_strided_slice %135 {offsets = [0, 32], sizes = [2, 32], strides = [1, 1]} : vector<2x128xf32> to vector<2x32xf32>
    %139 = vector.extract_strided_slice %136 {offsets = [0, 64], sizes = [2, 32], strides = [1, 1]} : vector<2x128xf32> to vector<2x32xf32>
    %140 = vector.extract_strided_slice %135 {offsets = [0, 96], sizes = [2, 32], strides = [1, 1]} : vector<2x128xf32> to vector<2x32xf32>
    %141 = arith.mulf %138, %105 : vector<2x32xf32>
    %142 = arith.mulf %137, %139 : vector<2x32xf32>
    %143 = arith.addf %141, %142 : vector<2x32xf32>
    %144 = math.tanh %143 : vector<2x32xf32>
    %145 = arith.mulf %140, %144 : vector<2x32xf32>
    %cst_34 = arith.constant dense<0.000000e+00> : vector<2x128xf32>
    %146 = tpu.matmul %145, %1, %cst_34 {dimension_numbers = #tpu.dot_dimension_numbers<[1], [0], [0], [1], [0, 0, 1, 1], [], []>} : vector<2x32xf32>, vector<32x128xf32>, vector<2x128xf32> -> vector<2x128xf32>
    %147 = vector.broadcast %5 : vector<1x128xf32> to vector<2x128xf32>
    %148 = arith.addf %146, %147 : vector<2x128xf32>
    %cst_35 = arith.constant dense<0.000000e+00> : vector<2x128xf32>
    %149 = tpu.matmul %127, %3, %cst_35 {dimension_numbers = #tpu.dot_dimension_numbers<[1], [0], [0], [1], [0, 0, 1, 1], [], []>} : vector<2x32xf32>, vector<32x128xf32>, vector<2x128xf32> -> vector<2x128xf32>
    %150 = arith.addf %148, %149 : vector<2x128xf32>
    %151 = arith.negf %150 : vector<2x128xf32>
    %152 = math.exp %151 : vector<2x128xf32>
    %cst_36 = arith.constant 1.000000e+00 : f32
    %153 = vector.broadcast %cst_36 : f32 to vector<2x128xf32>
    %154 = arith.addf %153, %152 : vector<2x128xf32>
    %155 = arith.divf %153, %154 : vector<2x128xf32>
    %156 = math.tanh %150 : vector<2x128xf32>
    %157 = vector.extract_strided_slice %155 {offsets = [0, 0], sizes = [2, 32], strides = [1, 1]} : vector<2x128xf32> to vector<2x32xf32>
    %158 = vector.extract_strided_slice %155 {offsets = [0, 32], sizes = [2, 32], strides = [1, 1]} : vector<2x128xf32> to vector<2x32xf32>
    %159 = vector.extract_strided_slice %156 {offsets = [0, 64], sizes = [2, 32], strides = [1, 1]} : vector<2x128xf32> to vector<2x32xf32>
    %160 = vector.extract_strided_slice %155 {offsets = [0, 96], sizes = [2, 32], strides = [1, 1]} : vector<2x128xf32> to vector<2x32xf32>
    %161 = arith.mulf %158, %125 : vector<2x32xf32>
    %162 = arith.mulf %157, %159 : vector<2x32xf32>
    %163 = arith.addf %161, %162 : vector<2x32xf32>
    %164 = math.tanh %163 : vector<2x32xf32>
    %165 = arith.mulf %160, %164 : vector<2x32xf32>
    %166 = vector.extract_strided_slice %9 {offsets = [8, 0], sizes = [2, 128], strides = [1, 1]} : vector<16x128xf32> to vector<2x128xf32>
    %cst_37 = arith.constant dense<0.000000e+00> : vector<2x128xf32>
    %167 = tpu.matmul %145, %2, %cst_37 {dimension_numbers = #tpu.dot_dimension_numbers<[1], [0], [0], [1], [0, 0, 1, 1], [], []>} : vector<2x32xf32>, vector<32x128xf32>, vector<2x128xf32> -> vector<2x128xf32>
    %168 = arith.addf %166, %167 : vector<2x128xf32>
    %169 = arith.negf %168 : vector<2x128xf32>
    %170 = math.exp %169 : vector<2x128xf32>
    %cst_38 = arith.constant 1.000000e+00 : f32
    %171 = vector.broadcast %cst_38 : f32 to vector<2x128xf32>
    %172 = arith.addf %171, %170 : vector<2x128xf32>
    %173 = arith.divf %171, %172 : vector<2x128xf32>
    %174 = math.tanh %168 : vector<2x128xf32>
    %175 = vector.extract_strided_slice %173 {offsets = [0, 0], sizes = [2, 32], strides = [1, 1]} : vector<2x128xf32> to vector<2x32xf32>
    %176 = vector.extract_strided_slice %173 {offsets = [0, 32], sizes = [2, 32], strides = [1, 1]} : vector<2x128xf32> to vector<2x32xf32>
    %177 = vector.extract_strided_slice %174 {offsets = [0, 64], sizes = [2, 32], strides = [1, 1]} : vector<2x128xf32> to vector<2x32xf32>
    %178 = vector.extract_strided_slice %173 {offsets = [0, 96], sizes = [2, 32], strides = [1, 1]} : vector<2x128xf32> to vector<2x32xf32>
    %179 = arith.mulf %176, %143 : vector<2x32xf32>
    %180 = arith.mulf %175, %177 : vector<2x32xf32>
    %181 = arith.addf %179, %180 : vector<2x32xf32>
    %182 = math.tanh %181 : vector<2x32xf32>
    %183 = arith.mulf %178, %182 : vector<2x32xf32>
    %cst_39 = arith.constant dense<0.000000e+00> : vector<2x128xf32>
    %184 = tpu.matmul %183, %1, %cst_39 {dimension_numbers = #tpu.dot_dimension_numbers<[1], [0], [0], [1], [0, 0, 1, 1], [], []>} : vector<2x32xf32>, vector<32x128xf32>, vector<2x128xf32> -> vector<2x128xf32>
    %185 = vector.broadcast %5 : vector<1x128xf32> to vector<2x128xf32>
    %186 = arith.addf %184, %185 : vector<2x128xf32>
    %cst_40 = arith.constant dense<0.000000e+00> : vector<2x128xf32>
    %187 = tpu.matmul %165, %3, %cst_40 {dimension_numbers = #tpu.dot_dimension_numbers<[1], [0], [0], [1], [0, 0, 1, 1], [], []>} : vector<2x32xf32>, vector<32x128xf32>, vector<2x128xf32> -> vector<2x128xf32>
    %188 = arith.addf %186, %187 : vector<2x128xf32>
    %189 = arith.negf %188 : vector<2x128xf32>
    %190 = math.exp %189 : vector<2x128xf32>
    %cst_41 = arith.constant 1.000000e+00 : f32
    %191 = vector.broadcast %cst_41 : f32 to vector<2x128xf32>
    %192 = arith.addf %191, %190 : vector<2x128xf32>
    %193 = arith.divf %191, %192 : vector<2x128xf32>
    %194 = math.tanh %188 : vector<2x128xf32>
    %195 = vector.extract_strided_slice %193 {offsets = [0, 0], sizes = [2, 32], strides = [1, 1]} : vector<2x128xf32> to vector<2x32xf32>
    %196 = vector.extract_strided_slice %193 {offsets = [0, 32], sizes = [2, 32], strides = [1, 1]} : vector<2x128xf32> to vector<2x32xf32>
    %197 = vector.extract_strided_slice %194 {offsets = [0, 64], sizes = [2, 32], strides = [1, 1]} : vector<2x128xf32> to vector<2x32xf32>
    %198 = vector.extract_strided_slice %193 {offsets = [0, 96], sizes = [2, 32], strides = [1, 1]} : vector<2x128xf32> to vector<2x32xf32>
    %199 = arith.mulf %196, %163 : vector<2x32xf32>
    %200 = arith.mulf %195, %197 : vector<2x32xf32>
    %201 = arith.addf %199, %200 : vector<2x32xf32>
    %202 = math.tanh %201 : vector<2x32xf32>
    %203 = arith.mulf %198, %202 : vector<2x32xf32>
    %204 = vector.extract_strided_slice %9 {offsets = [10, 0], sizes = [2, 128], strides = [1, 1]} : vector<16x128xf32> to vector<2x128xf32>
    %cst_42 = arith.constant dense<0.000000e+00> : vector<2x128xf32>
    %205 = tpu.matmul %183, %2, %cst_42 {dimension_numbers = #tpu.dot_dimension_numbers<[1], [0], [0], [1], [0, 0, 1, 1], [], []>} : vector<2x32xf32>, vector<32x128xf32>, vector<2x128xf32> -> vector<2x128xf32>
    %206 = arith.addf %204, %205 : vector<2x128xf32>
    %207 = arith.negf %206 : vector<2x128xf32>
    %208 = math.exp %207 : vector<2x128xf32>
    %cst_43 = arith.constant 1.000000e+00 : f32
    %209 = vector.broadcast %cst_43 : f32 to vector<2x128xf32>
    %210 = arith.addf %209, %208 : vector<2x128xf32>
    %211 = arith.divf %209, %210 : vector<2x128xf32>
    %212 = math.tanh %206 : vector<2x128xf32>
    %213 = vector.extract_strided_slice %211 {offsets = [0, 0], sizes = [2, 32], strides = [1, 1]} : vector<2x128xf32> to vector<2x32xf32>
    %214 = vector.extract_strided_slice %211 {offsets = [0, 32], sizes = [2, 32], strides = [1, 1]} : vector<2x128xf32> to vector<2x32xf32>
    %215 = vector.extract_strided_slice %212 {offsets = [0, 64], sizes = [2, 32], strides = [1, 1]} : vector<2x128xf32> to vector<2x32xf32>
    %216 = vector.extract_strided_slice %211 {offsets = [0, 96], sizes = [2, 32], strides = [1, 1]} : vector<2x128xf32> to vector<2x32xf32>
    %217 = arith.mulf %214, %181 : vector<2x32xf32>
    %218 = arith.mulf %213, %215 : vector<2x32xf32>
    %219 = arith.addf %217, %218 : vector<2x32xf32>
    %220 = math.tanh %219 : vector<2x32xf32>
    %221 = arith.mulf %216, %220 : vector<2x32xf32>
    %cst_44 = arith.constant dense<0.000000e+00> : vector<2x128xf32>
    %222 = tpu.matmul %221, %1, %cst_44 {dimension_numbers = #tpu.dot_dimension_numbers<[1], [0], [0], [1], [0, 0, 1, 1], [], []>} : vector<2x32xf32>, vector<32x128xf32>, vector<2x128xf32> -> vector<2x128xf32>
    %223 = vector.broadcast %5 : vector<1x128xf32> to vector<2x128xf32>
    %224 = arith.addf %222, %223 : vector<2x128xf32>
    %cst_45 = arith.constant dense<0.000000e+00> : vector<2x128xf32>
    %225 = tpu.matmul %203, %3, %cst_45 {dimension_numbers = #tpu.dot_dimension_numbers<[1], [0], [0], [1], [0, 0, 1, 1], [], []>} : vector<2x32xf32>, vector<32x128xf32>, vector<2x128xf32> -> vector<2x128xf32>
    %226 = arith.addf %224, %225 : vector<2x128xf32>
    %227 = arith.negf %226 : vector<2x128xf32>
    %228 = math.exp %227 : vector<2x128xf32>
    %cst_46 = arith.constant 1.000000e+00 : f32
    %229 = vector.broadcast %cst_46 : f32 to vector<2x128xf32>
    %230 = arith.addf %229, %228 : vector<2x128xf32>
    %231 = arith.divf %229, %230 : vector<2x128xf32>
    %232 = math.tanh %226 : vector<2x128xf32>
    %233 = vector.extract_strided_slice %231 {offsets = [0, 0], sizes = [2, 32], strides = [1, 1]} : vector<2x128xf32> to vector<2x32xf32>
    %234 = vector.extract_strided_slice %231 {offsets = [0, 32], sizes = [2, 32], strides = [1, 1]} : vector<2x128xf32> to vector<2x32xf32>
    %235 = vector.extract_strided_slice %232 {offsets = [0, 64], sizes = [2, 32], strides = [1, 1]} : vector<2x128xf32> to vector<2x32xf32>
    %236 = vector.extract_strided_slice %231 {offsets = [0, 96], sizes = [2, 32], strides = [1, 1]} : vector<2x128xf32> to vector<2x32xf32>
    %237 = arith.mulf %234, %201 : vector<2x32xf32>
    %238 = arith.mulf %233, %235 : vector<2x32xf32>
    %239 = arith.addf %237, %238 : vector<2x32xf32>
    %240 = math.tanh %239 : vector<2x32xf32>
    %241 = arith.mulf %236, %240 : vector<2x32xf32>
    %242 = vector.extract_strided_slice %9 {offsets = [12, 0], sizes = [2, 128], strides = [1, 1]} : vector<16x128xf32> to vector<2x128xf32>
    %cst_47 = arith.constant dense<0.000000e+00> : vector<2x128xf32>
    %243 = tpu.matmul %221, %2, %cst_47 {dimension_numbers = #tpu.dot_dimension_numbers<[1], [0], [0], [1], [0, 0, 1, 1], [], []>} : vector<2x32xf32>, vector<32x128xf32>, vector<2x128xf32> -> vector<2x128xf32>
    %244 = arith.addf %242, %243 : vector<2x128xf32>
    %245 = arith.negf %244 : vector<2x128xf32>
    %246 = math.exp %245 : vector<2x128xf32>
    %cst_48 = arith.constant 1.000000e+00 : f32
    %247 = vector.broadcast %cst_48 : f32 to vector<2x128xf32>
    %248 = arith.addf %247, %246 : vector<2x128xf32>
    %249 = arith.divf %247, %248 : vector<2x128xf32>
    %250 = math.tanh %244 : vector<2x128xf32>
    %251 = vector.extract_strided_slice %249 {offsets = [0, 0], sizes = [2, 32], strides = [1, 1]} : vector<2x128xf32> to vector<2x32xf32>
    %252 = vector.extract_strided_slice %249 {offsets = [0, 32], sizes = [2, 32], strides = [1, 1]} : vector<2x128xf32> to vector<2x32xf32>
    %253 = vector.extract_strided_slice %250 {offsets = [0, 64], sizes = [2, 32], strides = [1, 1]} : vector<2x128xf32> to vector<2x32xf32>
    %254 = vector.extract_strided_slice %249 {offsets = [0, 96], sizes = [2, 32], strides = [1, 1]} : vector<2x128xf32> to vector<2x32xf32>
    %255 = arith.mulf %252, %219 : vector<2x32xf32>
    %256 = arith.mulf %251, %253 : vector<2x32xf32>
    %257 = arith.addf %255, %256 : vector<2x32xf32>
    %258 = math.tanh %257 : vector<2x32xf32>
    %259 = arith.mulf %254, %258 : vector<2x32xf32>
    %cst_49 = arith.constant dense<0.000000e+00> : vector<2x128xf32>
    %260 = tpu.matmul %259, %1, %cst_49 {dimension_numbers = #tpu.dot_dimension_numbers<[1], [0], [0], [1], [0, 0, 1, 1], [], []>} : vector<2x32xf32>, vector<32x128xf32>, vector<2x128xf32> -> vector<2x128xf32>
    %261 = vector.broadcast %5 : vector<1x128xf32> to vector<2x128xf32>
    %262 = arith.addf %260, %261 : vector<2x128xf32>
    %cst_50 = arith.constant dense<0.000000e+00> : vector<2x128xf32>
    %263 = tpu.matmul %241, %3, %cst_50 {dimension_numbers = #tpu.dot_dimension_numbers<[1], [0], [0], [1], [0, 0, 1, 1], [], []>} : vector<2x32xf32>, vector<32x128xf32>, vector<2x128xf32> -> vector<2x128xf32>
    %264 = arith.addf %262, %263 : vector<2x128xf32>
    %265 = arith.negf %264 : vector<2x128xf32>
    %266 = math.exp %265 : vector<2x128xf32>
    %cst_51 = arith.constant 1.000000e+00 : f32
    %267 = vector.broadcast %cst_51 : f32 to vector<2x128xf32>
    %268 = arith.addf %267, %266 : vector<2x128xf32>
    %269 = arith.divf %267, %268 : vector<2x128xf32>
    %270 = math.tanh %264 : vector<2x128xf32>
    %271 = vector.extract_strided_slice %269 {offsets = [0, 0], sizes = [2, 32], strides = [1, 1]} : vector<2x128xf32> to vector<2x32xf32>
    %272 = vector.extract_strided_slice %269 {offsets = [0, 32], sizes = [2, 32], strides = [1, 1]} : vector<2x128xf32> to vector<2x32xf32>
    %273 = vector.extract_strided_slice %270 {offsets = [0, 64], sizes = [2, 32], strides = [1, 1]} : vector<2x128xf32> to vector<2x32xf32>
    %274 = vector.extract_strided_slice %269 {offsets = [0, 96], sizes = [2, 32], strides = [1, 1]} : vector<2x128xf32> to vector<2x32xf32>
    %275 = arith.mulf %272, %239 : vector<2x32xf32>
    %276 = arith.mulf %271, %273 : vector<2x32xf32>
    %277 = arith.addf %275, %276 : vector<2x32xf32>
    %278 = math.tanh %277 : vector<2x32xf32>
    %279 = arith.mulf %274, %278 : vector<2x32xf32>
    %280 = vector.extract_strided_slice %9 {offsets = [14, 0], sizes = [2, 128], strides = [1, 1]} : vector<16x128xf32> to vector<2x128xf32>
    %cst_52 = arith.constant dense<0.000000e+00> : vector<2x128xf32>
    %281 = tpu.matmul %259, %2, %cst_52 {dimension_numbers = #tpu.dot_dimension_numbers<[1], [0], [0], [1], [0, 0, 1, 1], [], []>} : vector<2x32xf32>, vector<32x128xf32>, vector<2x128xf32> -> vector<2x128xf32>
    %282 = arith.addf %280, %281 : vector<2x128xf32>
    %283 = arith.negf %282 : vector<2x128xf32>
    %284 = math.exp %283 : vector<2x128xf32>
    %cst_53 = arith.constant 1.000000e+00 : f32
    %285 = vector.broadcast %cst_53 : f32 to vector<2x128xf32>
    %286 = arith.addf %285, %284 : vector<2x128xf32>
    %287 = arith.divf %285, %286 : vector<2x128xf32>
    %288 = math.tanh %282 : vector<2x128xf32>
    %289 = vector.extract_strided_slice %287 {offsets = [0, 0], sizes = [2, 32], strides = [1, 1]} : vector<2x128xf32> to vector<2x32xf32>
    %290 = vector.extract_strided_slice %287 {offsets = [0, 32], sizes = [2, 32], strides = [1, 1]} : vector<2x128xf32> to vector<2x32xf32>
    %291 = vector.extract_strided_slice %288 {offsets = [0, 64], sizes = [2, 32], strides = [1, 1]} : vector<2x128xf32> to vector<2x32xf32>
    %292 = vector.extract_strided_slice %287 {offsets = [0, 96], sizes = [2, 32], strides = [1, 1]} : vector<2x128xf32> to vector<2x32xf32>
    %293 = arith.mulf %290, %257 : vector<2x32xf32>
    %294 = arith.mulf %289, %291 : vector<2x32xf32>
    %295 = arith.addf %293, %294 : vector<2x32xf32>
    %296 = math.tanh %295 : vector<2x32xf32>
    %297 = arith.mulf %292, %296 : vector<2x32xf32>
    %cst_54 = arith.constant dense<0.000000e+00> : vector<2x128xf32>
    %298 = tpu.matmul %297, %1, %cst_54 {dimension_numbers = #tpu.dot_dimension_numbers<[1], [0], [0], [1], [0, 0, 1, 1], [], []>} : vector<2x32xf32>, vector<32x128xf32>, vector<2x128xf32> -> vector<2x128xf32>
    %299 = vector.broadcast %5 : vector<1x128xf32> to vector<2x128xf32>
    %300 = arith.addf %298, %299 : vector<2x128xf32>
    %cst_55 = arith.constant dense<0.000000e+00> : vector<2x128xf32>
    %301 = tpu.matmul %279, %3, %cst_55 {dimension_numbers = #tpu.dot_dimension_numbers<[1], [0], [0], [1], [0, 0, 1, 1], [], []>} : vector<2x32xf32>, vector<32x128xf32>, vector<2x128xf32> -> vector<2x128xf32>
    %302 = arith.addf %300, %301 : vector<2x128xf32>
    %303 = arith.negf %302 : vector<2x128xf32>
    %304 = math.exp %303 : vector<2x128xf32>
    %cst_56 = arith.constant 1.000000e+00 : f32
    %305 = vector.broadcast %cst_56 : f32 to vector<2x128xf32>
    %306 = arith.addf %305, %304 : vector<2x128xf32>
    %307 = arith.divf %305, %306 : vector<2x128xf32>
    %308 = math.tanh %302 : vector<2x128xf32>
    %309 = vector.extract_strided_slice %307 {offsets = [0, 0], sizes = [2, 32], strides = [1, 1]} : vector<2x128xf32> to vector<2x32xf32>
    %310 = vector.extract_strided_slice %307 {offsets = [0, 32], sizes = [2, 32], strides = [1, 1]} : vector<2x128xf32> to vector<2x32xf32>
    %311 = vector.extract_strided_slice %308 {offsets = [0, 64], sizes = [2, 32], strides = [1, 1]} : vector<2x128xf32> to vector<2x32xf32>
    %312 = vector.extract_strided_slice %307 {offsets = [0, 96], sizes = [2, 32], strides = [1, 1]} : vector<2x128xf32> to vector<2x32xf32>
    %313 = arith.mulf %310, %277 : vector<2x32xf32>
    %314 = arith.mulf %309, %311 : vector<2x32xf32>
    %315 = arith.addf %313, %314 : vector<2x32xf32>
    %316 = math.tanh %315 : vector<2x32xf32>
    %317 = arith.mulf %312, %316 : vector<2x32xf32>
    %318 = vector.extract_strided_slice %297 {offsets = [0, 0], sizes = [1, 32], strides = [1, 1]} : vector<2x32xf32> to vector<1x32xf32>
    %c0_57 = arith.constant 0 : index
    %c0_58 = arith.constant 0 : index
    %319 = vector.load %arg10[%c0_57, %c0_58] : memref<2x64xf32, #tpu.memory_space<vmem>>, vector<1x32xf32>
    tpu.vector_store %arg10[%c0_57, %c0_58], %318 {strides = array<i32>} : memref<2x64xf32, #tpu.memory_space<vmem>>, vector<1x32xf32>,
    %320 = vector.extract_strided_slice %297 {offsets = [1, 0], sizes = [1, 32], strides = [1, 1]} : vector<2x32xf32> to vector<1x32xf32>
    %c0_59 = arith.constant 0 : index
    %c32 = arith.constant 32 : index
    %321 = vector.load %arg10[%c0_59, %c32] : memref<2x64xf32, #tpu.memory_space<vmem>>, vector<1x32xf32>
    tpu.vector_store %arg10[%c0_59, %c32], %320 {strides = array<i32>} : memref<2x64xf32, #tpu.memory_space<vmem>>, vector<1x32xf32>,
    %322 = vector.extract_strided_slice %317 {offsets = [0, 0], sizes = [1, 32], strides = [1, 1]} : vector<2x32xf32> to vector<1x32xf32>
    %c1 = arith.constant 1 : index
    %c0_60 = arith.constant 0 : index
    %323 = vector.load %arg10[%c1, %c0_60] : memref<2x64xf32, #tpu.memory_space<vmem>>, vector<1x32xf32>
    tpu.vector_store %arg10[%c1, %c0_60], %322 {strides = array<i32>} : memref<2x64xf32, #tpu.memory_space<vmem>>, vector<1x32xf32>,
    %324 = vector.extract_strided_slice %317 {offsets = [1, 0], sizes = [1, 32], strides = [1, 1]} : vector<2x32xf32> to vector<1x32xf32>
    %c1_61 = arith.constant 1 : index
    %c32_62 = arith.constant 32 : index
    %325 = vector.load %arg10[%c1_61, %c32_62] : memref<2x64xf32, #tpu.memory_space<vmem>>, vector<1x32xf32>
    tpu.vector_store %arg10[%c1_61, %c32_62], %324 {strides = array<i32>} : memref<2x64xf32, #tpu.memory_space<vmem>>, vector<1x32xf32>,
    %c0_63 = arith.constant 0 : index
    %c0_64 = arith.constant 0 : index
    %326 = vector.load %arg10[%c0_63, %c0_64] : memref<2x64xf32, #tpu.memory_space<vmem>>, vector<2x64xf32>
    %c0_65 = arith.constant 0 : index
    %c0_66 = arith.constant 0 : index
    %327 = vector.load %arg7[%c0_65, %c0_66] : memref<128x3xf32, #tpu.memory_space<vmem>>, vector<128x3xf32>
    %328 = vector.extract_strided_slice %327 {offsets = [0, 0], sizes = [64, 3], strides = [1, 1]} : vector<128x3xf32> to vector<64x3xf32>
    %329 = vector.extract_strided_slice %327 {offsets = [64, 0], sizes = [64, 3], strides = [1, 1]} : vector<128x3xf32> to vector<64x3xf32>
    %330 = arith.addf %328, %329 : vector<64x3xf32>
    %cst_67 = arith.constant dense<0.000000e+00> : vector<2x3xf32>
    %331 = tpu.matmul %326, %330, %cst_67 {dimension_numbers = #tpu.dot_dimension_numbers<[1], [0], [0], [1], [0, 0, 1, 1], [], []>} : vector<2x64xf32>, vector<64x3xf32>, vector<2x3xf32> -> vector<2x3xf32>
    %c0_68 = arith.constant 0 : index
    %c0_69 = arith.constant 0 : index
    %332 = vector.load %arg8[%c0_68, %c0_69] : memref<1x3xf32, #tpu.memory_space<vmem>>, vector<1x3xf32>
    %333 = vector.broadcast %332 : vector<1x3xf32> to vector<2x3xf32>
    %334 = arith.addf %331, %333 : vector<2x3xf32>
    %c0_70 = arith.constant 0 : index
    %c0_71 = arith.constant 0 : index
    %335 = vector.load %arg9[%c0_70, %c0_71] : memref<2x3xf32, #tpu.memory_space<vmem>>, vector<2x3xf32>
    tpu.vector_store %arg9[%c0_70, %c0_71], %334 {strides = array<i32>} : memref<2x3xf32, #tpu.memory_space<vmem>>, vector<2x3xf32>,
    return
  }
}

</mosaic_0001>

<llo_original>
// kernel: parameter_estimator_forward.1
$region0: #{parameter_estimator_forward.1}
  #allocation0 [shape = 'u32[]', space=smem, size = 0x4, offset = 0x4, fixed_abs, tag = 'smem constant byte address 0x4 - core index']
  #allocation1 [shape = 'u32[144,128]{1,0:T(1,128)}', space=vmem, size = 0x12000, scoped, tag = 'internal scratch']
  #allocation2 [shape = 'f32[2,64]{1,0:T(2,128)}', space=vmem, size = 0x400, scoped, tag = 'scratch operand']
  %s0 = inlined_call_operand.vmem [shape: f32[16,4], index: 0, kind: input, shape index: {}]
  %s1 = inlined_call_operand.vmem [shape: f32[4,128], index: 1, kind: input, shape index: {}]
  %s2 = inlined_call_operand.vmem [shape: f32[32,128], index: 2, kind: input, shape index: {}]
  %s3 = inlined_call_operand.vmem [shape: f32[1,128], index: 3, kind: input, shape index: {}]
  %s4 = inlined_call_operand.vmem [shape: f32[32,128], index: 4, kind: input, shape index: {}]
  %s5 = inlined_call_operand.vmem [shape: f32[32,128], index: 5, kind: input, shape index: {}]
  %s6 = inlined_call_operand.vmem [shape: f32[1,128], index: 6, kind: input, shape index: {}]
  %s7 = inlined_call_operand.vmem [shape: f32[128,3], index: 7, kind: input, shape index: {}]
  %s8 = inlined_call_operand.vmem [shape: f32[1,3], index: 8, kind: input, shape index: {}]
  %s9 = inlined_call_operand.hbm [shape: f32[2,3], index: 9, kind: output, shape index: {}]
  %s10 = sld [smem:[#allocation0]]
  $region46: #{parameter_estimator_forward.1} parent=0
    _
  %s12 = ssub.s32 1, %s10
  %s13 = scalar_select 0, %s12, %s10
  $region1: #{parameter_estimator_forward.1} parent=0
    #allocation3 [shape = 'u8[1024]{0}', space=vmem, size = 0x400, scoped, tag = 'output window, operand 0, single buffered']
    #allocation4 [shape = 's32[1]{0}', space=sflag, size = 0x4, scoped, tag = 'scoped memory for parameter_estimator_forward.1']
    %14 = vsyncpa [#allocation4], 0
    // Predicated region
    $region2: #{parameter_estimator_forward.1} parent=1 // pred_check
      _
    $region3: #{parameter_estimator_forward.1} parent=1 // pred_check_branch
      %16 = sbr.rel (0) target = $region5
    $region4: #{parameter_estimator_forward.1} parent=1 // pred_region
      _
    $region5: #{parameter_estimator_forward.1} parent=1 // pred_fallthru
      _
    // Predicated region
    $region6: #{parameter_estimator_forward.1} parent=1 // pred_check
      _
    $region7: #{parameter_estimator_forward.1} parent=1 // pred_check_branch
      %18 = sbr.rel (0) target = $region9
    $region8: #{parameter_estimator_forward.1} parent=1 // pred_region
      _
    $region9: #{parameter_estimator_forward.1} parent=1 // pred_fallthru
      _
    // Predicated region
    $region10: #{parameter_estimator_forward.1} parent=1 // pred_check
      _
    $region11: #{parameter_estimator_forward.1} parent=1 // pred_check_branch
      %20 = sbr.rel (0) target = $region13
    $region12: #{parameter_estimator_forward.1} parent=1 // pred_region
      _
    $region13: #{parameter_estimator_forward.1} parent=1 // pred_fallthru
      _
    // Predicated region
    $region14: #{parameter_estimator_forward.1} parent=1 // pred_check
      _
    $region15: #{parameter_estimator_forward.1} parent=1 // pred_check_branch
      %22 = sbr.rel (0) target = $region17
    $region16: #{parameter_estimator_forward.1} parent=1 // pred_region
      _
    $region17: #{parameter_estimator_forward.1} parent=1 // pred_fallthru
      _
    // Predicated region
    $region18: #{parameter_estimator_forward.1} parent=1 // pred_check
      _
    $region19: #{parameter_estimator_forward.1} parent=1 // pred_check_branch
      %24 = sbr.rel (0) target = $region21
    $region20: #{parameter_estimator_forward.1} parent=1 // pred_region
      _
    $region21: #{parameter_estimator_forward.1} parent=1 // pred_fallthru
      _
    // Predicated region
    $region22: #{parameter_estimator_forward.1} parent=1 // pred_check
      _
    $region23: #{parameter_estimator_forward.1} parent=1 // pred_check_branch
      %26 = sbr.rel (0) target = $region25
    $region24: #{parameter_estimator_forward.1} parent=1 // pred_region
      _
    $region25: #{parameter_estimator_forward.1} parent=1 // pred_fallthru
      _
    // Predicated region
    $region26: #{parameter_estimator_forward.1} parent=1 // pred_check
      _
    $region27: #{parameter_estimator_forward.1} parent=1 // pred_check_branch
      %28 = sbr.rel (0) target = $region29
    $region28: #{parameter_estimator_forward.1} parent=1 // pred_region
      _
    $region29: #{parameter_estimator_forward.1} parent=1 // pred_fallthru
      _
    // Predicated region
    $region30: #{parameter_estimator_forward.1} parent=1 // pred_check
      _
    $region31: #{parameter_estimator_forward.1} parent=1 // pred_check_branch
      %30 = sbr.rel (0) target = $region33
    $region32: #{parameter_estimator_forward.1} parent=1 // pred_region
      _
    $region33: #{parameter_estimator_forward.1} parent=1 // pred_fallthru
      _
    // Predicated region
    $region34: #{parameter_estimator_forward.1} parent=1 // pred_check
      _
    $region35: #{parameter_estimator_forward.1} parent=1 // pred_check_branch
      %32 = sbr.rel (0) target = $region37
    $region36: #{parameter_estimator_forward.1} parent=1 // pred_region
      _
    $region37: #{parameter_estimator_forward.1} parent=1 // pred_fallthru
      _
    %v33 = vld [vmem:[%s1] sm:$0xf]
    %v34 = vld [vmem:[%s4] sm:$0xff]
    %v35 = vld [vmem:[%s4 + $0x8] sm:$0xff]
    %v36 = vld [vmem:[%s4 + $0x10] sm:$0xff]
    %v37 = vld [vmem:[%s4 + $0x18] sm:$0xff]
    %v38 = vld [vmem:[%s2] sm:$0xff]
    %v39 = vld [vmem:[%s2 + $0x8] sm:$0xff]
    %v40 = vld [vmem:[%s2 + $0x10] sm:$0xff]
    %v41 = vld [vmem:[%s2 + $0x18] sm:$0xff]
    %v42 = vld [vmem:[%s5] sm:$0xff]
    %v43 = vld [vmem:[%s5 + $0x8] sm:$0xff]
    %v44 = vld [vmem:[%s5 + $0x10] sm:$0xff]
    %v45 = vld [vmem:[%s5 + $0x18] sm:$0xff]
    %v46 = vld [vmem:[%s3] sm:$0x1]
    %v47 = vld [vmem:[%s6] sm:$0x1]
    %v48 = vld [vmem:[%s0] sm:$0xff]
    %v49 = vld [vmem:[%s0 + $0x8] sm:$0xff]
    %v51 = vlaneseq
    %v52 = vshrl.u32 %v51, 7
    %v53 = vsub.s32 0, %v52
    %v54 = vrot.slane %v46, %v53
    %vm56 = vcmask 31744
    %v58 = vsel %vm56, %v48, 0
    %v61 = vsel %vm56, %v49, 0
    %vm63 = vcmask 1043456
    %v65 = vsel %vm63, %v33, 0
    %67 = vmatprep.subr.mxu0 0.0
    %68 = vmatpush1.msra.mxu0 0.0
    %69 = vmatprep.subr.mxu0 0.0
    %70 = vmatpush1.msra.mxu0 0.0
    %71 = vmatprep.subr.mxu0 0.0
    %72 = vmatpush1.msra.mxu0 0.0
    %73 = vmatprep.subr.mxu0 0.0
    %74 = vmatpush1.msra.mxu0 0.0
    %75 = vmatprep.subr.mxu0 0.0
    %76 = vmatpush1.msra.mxu0 0.0
    %77 = vmatprep.subr.mxu0 0.0
    %78 = vmatpush1.msra.mxu0 0.0
    %79 = vmatprep.subr.mxu0 0.0
    %80 = vmatpush1.msra.mxu0 0.0
    %81 = vmatprep.subr.mxu0 0.0
    %82 = vmatpush1.msra.mxu0 0.0
    %83 = vmatprep.subr.mxu0 0.0
    %84 = vmatpush1.msra.mxu0 0.0
    %85 = vmatprep.subr.mxu0 0.0
    %86 = vmatpush1.msra.mxu0 0.0
    %87 = vmatprep.subr.mxu0 0.0
    %88 = vmatpush1.msra.mxu0 0.0
    %89 = vmatprep.subr.mxu0 0.0
    %90 = vmatpush1.msra.mxu0 0.0
    %91 = vmatprep.subr.mxu0 0.0
    %92 = vmatpush1.msra.mxu0 0.0
    %93 = vmatprep.subr.mxu0 0.0
    %94 = vmatpush1.msra.mxu0 0.0
    %95 = vmatprep.subr.mxu0 0.0
    %96 = vmatpush1.msra.mxu0 0.0
    %97 = vmatprep.subr.mxu0 0.0
    %98 = vmatpush1.msra.mxu0 %v65
    %99 = vmatprep.subr.mxu0 0.0
    %100 = vmatpush2.msra.mxu0 0.0
    %101 = vmatprep.subr.mxu0 0.0
    %102 = vmatpush2.msra.mxu0 0.0
    %103 = vmatprep.subr.mxu0 0.0
    %104 = vmatpush2.msra.mxu0 0.0
    %105 = vmatprep.subr.mxu0 0.0
    %106 = vmatpush2.msra.mxu0 0.0
    %107 = vmatprep.subr.mxu0 0.0
    %108 = vmatpush2.msra.mxu0 0.0
    %109 = vmatprep.subr.mxu0 0.0
    %110 = vmatpush2.msra.mxu0 0.0
    %111 = vmatprep.subr.mxu0 0.0
    %112 = vmatpush2.msra.mxu0 0.0
    %113 = vmatprep.subr.mxu0 0.0
    %114 = vmatpush2.msra.mxu0 0.0
    %115 = vmatprep.subr.mxu0 0.0
    %116 = vmatpush2.msra.mxu0 0.0
    %117 = vmatprep.subr.mxu0 0.0
    %118 = vmatpush2.msra.mxu0 0.0
    %119 = vmatprep.subr.mxu0 0.0
    %120 = vmatpush2.msra.mxu0 0.0
    %121 = vmatprep.subr.mxu0 0.0
    %122 = vmatpush2.msra.mxu0 0.0
    %123 = vmatprep.subr.mxu0 0.0
    %124 = vmatpush2.msra.mxu0 0.0
    %125 = vmatprep.subr.mxu0 0.0
    %126 = vmatpush2.msra.mxu0 0.0
    %127 = vmatprep.subr.mxu0 0.0
    %128 = vmatpush2.msra.mxu0 0.0
    %129 = vmatprep.subr.mxu0 0.0
    %130 = vmatpush2.msra.mxu0 0.0
    %131 = vmatprep.mubr.f32.mxu0 0.0
    %132 = vmatmul.mubr.f32.gmra.mxu0 %v58
    %v133 = vpop.f32.mrf.mxu0
    %v134 = vadd.f32 %v54, %v133
    %v135 = vpop.f32.mrf.mxu0
    %136 = vmatprep.mubr.f32.mxu0 0.0
    %137 = vmatmul.mubr.f32.gmra.mxu0 %v61
    %v138 = vpop.f32.mrf.mxu0
    %v139 = vadd.f32 %v54, %v138
    %v140 = vpop.f32.mrf.mxu0
    %141 = vdwg.mxu0
    %vm142 = vcmask 261120
    %v144 = vsel %vm142, 0.0, 0
    %146 = vmatprep.subr.mxu0 0.0
    %147 = vmatpush1.msra.mxu0 0.0
    %148 = vmatprep.subr.mxu0 0.0
    %149 = vmatpush1.msra.mxu0 0.0
    %150 = vmatprep.subr.mxu0 0.0
    %151 = vmatpush1.msra.mxu0 0.0
    %152 = vmatprep.subr.mxu0 0.0
    %153 = vmatpush1.msra.mxu0 0.0
    %154 = vmatprep.subr.mxu0 0.0
    %155 = vmatpush1.msra.mxu0 0.0
    %156 = vmatprep.subr.mxu0 0.0
    %157 = vmatpush1.msra.mxu0 0.0
    %158 = vmatprep.subr.mxu0 0.0
    %159 = vmatpush1.msra.mxu0 0.0
    %160 = vmatprep.subr.mxu0 0.0
    %161 = vmatpush1.msra.mxu0 0.0
    %162 = vmatprep.subr.mxu0 0.0
    %163 = vmatpush1.msra.mxu0 0.0
    %164 = vmatprep.subr.mxu0 0.0
    %165 = vmatpush1.msra.mxu0 0.0
    %166 = vmatprep.subr.mxu0 0.0
    %167 = vmatpush1.msra.mxu0 0.0
    %168 = vmatprep.subr.mxu0 0.0
    %169 = vmatpush1.msra.mxu0 0.0
    %170 = vmatprep.subr.mxu0 0.0
    %171 = vmatpush1.msra.mxu0 %v41
    %172 = vmatprep.subr.mxu0 0.0
    %173 = vmatpush1.msra.mxu0 %v40
    %174 = vmatprep.subr.mxu0 0.0
    %175 = vmatpush1.msra.mxu0 %v39
    %176 = vmatprep.subr.mxu0 0.0
    %177 = vmatpush1.msra.mxu0 %v38
    %178 = vmatprep.subr.mxu0 0.0
    %179 = vmatpush2.msra.mxu0 0.0
    %180 = vmatprep.subr.mxu0 0.0
    %181 = vmatpush2.msra.mxu0 0.0
    %182 = vmatprep.subr.mxu0 0.0
    %183 = vmatpush2.msra.mxu0 0.0
    %184 = vmatprep.subr.mxu0 0.0
    %185 = vmatpush2.msra.mxu0 0.0
    %186 = vmatprep.subr.mxu0 0.0
    %187 = vmatpush2.msra.mxu0 0.0
    %188 = vmatprep.subr.mxu0 0.0
    %189 = vmatpush2.msra.mxu0 0.0
    %190 = vmatprep.subr.mxu0 0.0
    %191 = vmatpush2.msra.mxu0 0.0
    %192 = vmatprep.subr.mxu0 0.0
    %193 = vmatpush2.msra.mxu0 0.0
    %194 = vmatprep.subr.mxu0 0.0
    %195 = vmatpush2.msra.mxu0 0.0
    %196 = vmatprep.subr.mxu0 0.0
    %197 = vmatpush2.msra.mxu0 0.0
    %198 = vmatprep.subr.mxu0 0.0
    %199 = vmatpush2.msra.mxu0 0.0
    %200 = vmatprep.subr.mxu0 0.0
    %201 = vmatpush2.msra.mxu0 0.0
    %202 = vmatprep.subr.mxu0 0.0
    %203 = vmatpush2.msra.mxu0 0.0
    %204 = vmatprep.subr.mxu0 0.0
    %205 = vmatpush2.msra.mxu0 0.0
    %206 = vmatprep.subr.mxu0 0.0
    %207 = vmatpush2.msra.mxu0 0.0
    %208 = vmatprep.subr.mxu0 0.0
    %209 = vmatpush2.msra.mxu0 0.0
    %210 = vmatprep.mubr.f32.mxu0 0.0
    %211 = vmatmul.mubr.f32.gmra.mxu0 %v144
    %v212 = vpop.f32.mrf.mxu0
    %v213 = vadd.f32 0.0, %v212
    %v214 = vpop.f32.mrf.mxu0
    %215 = vdwg.mxu0
    %v216 = vadd.f32 %v134, %v213
    %v217 = vxor.u32 %v216, 2147483648
    %v218 = vmul.f32 %v217, 1.442695
    %v219 = vpow.pop %v218
    %v220 = vadd.f32 %v219, 1.0
    %v221 = vrcp.pop %v220
    %v222 = vmul.f32 1.0, %v221
    %v223 = vtanh.pop %v216
    %v224 = vmul.f32 %v222, 0.0
    %226 = vrot.lane.b32.xlu0 %v223, 64
    %v227 = vpop.permute.xlu0 %226
    %v229 = vmul.f32 %v222, %v227
    %231 = vrot.lane.b32.xlu0 %v229, 32
    %v232 = vpop.permute.xlu0 %231
    %v234 = vadd.f32 %v224, %v232
    %v235 = vtanh.pop %v234
    %237 = vrot.lane.b32.xlu0 %v235, 64
    %v238 = vpop.permute.xlu0 %237
    %v240 = vmul.f32 %v222, %v238
    %v242 = vlaneseq
    %v243 = vshrl.u32 %v242, 7
    %v244 = vsub.s32 0, %v243
    %v245 = vrot.slane %v47, %v244
    %248 = vrot.lane.b32.xlu0 %v240, 32
    %v249 = vpop.permute.xlu0 %248
    %v250 = vsel %vm142, %v249, 0
    %252 = vmatprep.subr.mxu0 0.0
    %253 = vmatpush1.msra.mxu0 0.0
    %254 = vmatprep.subr.mxu0 0.0
    %255 = vmatpush1.msra.mxu0 0.0
    %256 = vmatprep.subr.mxu0 0.0
    %257 = vmatpush1.msra.mxu0 0.0
    %258 = vmatprep.subr.mxu0 0.0
    %259 = vmatpush1.msra.mxu0 0.0
    %260 = vmatprep.subr.mxu0 0.0
    %261 = vmatpush1.msra.mxu0 0.0
    %262 = vmatprep.subr.mxu0 0.0
    %263 = vmatpush1.msra.mxu0 0.0
    %264 = vmatprep.subr.mxu0 0.0
    %265 = vmatpush1.msra.mxu0 0.0
    %266 = vmatprep.subr.mxu0 0.0
    %267 = vmatpush1.msra.mxu0 0.0
    %268 = vmatprep.subr.mxu0 0.0
    %269 = vmatpush1.msra.mxu0 0.0
    %270 = vmatprep.subr.mxu0 0.0
    %271 = vmatpush1.msra.mxu0 0.0
    %272 = vmatprep.subr.mxu0 0.0
    %273 = vmatpush1.msra.mxu0 0.0
    %274 = vmatprep.subr.mxu0 0.0
    %275 = vmatpush1.msra.mxu0 0.0
    %276 = vmatprep.subr.mxu0 0.0
    %277 = vmatpush1.msra.mxu0 %v37
    %278 = vmatprep.subr.mxu0 0.0
    %279 = vmatpush1.msra.mxu0 %v36
    %280 = vmatprep.subr.mxu0 0.0
    %281 = vmatpush1.msra.mxu0 %v35
    %282 = vmatprep.subr.mxu0 0.0
    %283 = vmatpush1.msra.mxu0 %v34
    %284 = vmatprep.subr.mxu0 0.0
    %285 = vmatpush2.msra.mxu0 0.0
    %286 = vmatprep.subr.mxu0 0.0
    %287 = vmatpush2.msra.mxu0 0.0
    %288 = vmatprep.subr.mxu0 0.0
    %289 = vmatpush2.msra.mxu0 0.0
    %290 = vmatprep.subr.mxu0 0.0
    %291 = vmatpush2.msra.mxu0 0.0
    %292 = vmatprep.subr.mxu0 0.0
    %293 = vmatpush2.msra.mxu0 0.0
    %294 = vmatprep.subr.mxu0 0.0
    %295 = vmatpush2.msra.mxu0 0.0
    %296 = vmatprep.subr.mxu0 0.0
    %297 = vmatpush2.msra.mxu0 0.0
    %298 = vmatprep.subr.mxu0 0.0
    %299 = vmatpush2.msra.mxu0 0.0
    %300 = vmatprep.subr.mxu0 0.0
    %301 = vmatpush2.msra.mxu0 0.0
    %302 = vmatprep.subr.mxu0 0.0
    %303 = vmatpush2.msra.mxu0 0.0
    %304 = vmatprep.subr.mxu0 0.0
    %305 = vmatpush2.msra.mxu0 0.0
    %306 = vmatprep.subr.mxu0 0.0
    %307 = vmatpush2.msra.mxu0 0.0
    %308 = vmatprep.subr.mxu0 0.0
    %309 = vmatpush2.msra.mxu0 0.0
    %310 = vmatprep.subr.mxu0 0.0
    %311 = vmatpush2.msra.mxu0 0.0
    %312 = vmatprep.subr.mxu0 0.0
    %313 = vmatpush2.msra.mxu0 0.0
    %314 = vmatprep.subr.mxu0 0.0
    %315 = vmatpush2.msra.mxu0 0.0
    %316 = vmatprep.mubr.f32.mxu0 0.0
    %317 = vmatmul.mubr.f32.gmra.mxu0 %v250
    %v318 = vpop.f32.mrf.mxu0
    %v319 = vadd.f32 %v245, %v318
    %v320 = vpop.f32.mrf.mxu0
    %321 = vdwg.mxu0
    %322 = vmatprep.subr.mxu0 0.0
    %323 = vmatpush1.msra.mxu0 0.0
    %324 = vmatprep.subr.mxu0 0.0
    %325 = vmatpush1.msra.mxu0 0.0
    %326 = vmatprep.subr.mxu0 0.0
    %327 = vmatpush1.msra.mxu0 0.0
    %328 = vmatprep.subr.mxu0 0.0
    %329 = vmatpush1.msra.mxu0 0.0
    %330 = vmatprep.subr.mxu0 0.0
    %331 = vmatpush1.msra.mxu0 0.0
    %332 = vmatprep.subr.mxu0 0.0
    %333 = vmatpush1.msra.mxu0 0.0
    %334 = vmatprep.subr.mxu0 0.0
    %335 = vmatpush1.msra.mxu0 0.0
    %336 = vmatprep.subr.mxu0 0.0
    %337 = vmatpush1.msra.mxu0 0.0
    %338 = vmatprep.subr.mxu0 0.0
    %339 = vmatpush1.msra.mxu0 0.0
    %340 = vmatprep.subr.mxu0 0.0
    %341 = vmatpush1.msra.mxu0 0.0
    %342 = vmatprep.subr.mxu0 0.0
    %343 = vmatpush1.msra.mxu0 0.0
    %344 = vmatprep.subr.mxu0 0.0
    %345 = vmatpush1.msra.mxu0 0.0
    %346 = vmatprep.subr.mxu0 0.0
    %347 = vmatpush1.msra.mxu0 %v45
    %348 = vmatprep.subr.mxu0 0.0
    %349 = vmatpush1.msra.mxu0 %v44
    %350 = vmatprep.subr.mxu0 0.0
    %351 = vmatpush1.msra.mxu0 %v43
    %352 = vmatprep.subr.mxu0 0.0
    %353 = vmatpush1.msra.mxu0 %v42
    %354 = vmatprep.subr.mxu0 0.0
    %355 = vmatpush2.msra.mxu0 0.0
    %356 = vmatprep.subr.mxu0 0.0
    %357 = vmatpush2.msra.mxu0 0.0
    %358 = vmatprep.subr.mxu0 0.0
    %359 = vmatpush2.msra.mxu0 0.0
    %360 = vmatprep.subr.mxu0 0.0
    %361 = vmatpush2.msra.mxu0 0.0
    %362 = vmatprep.subr.mxu0 0.0
    %363 = vmatpush2.msra.mxu0 0.0
    %364 = vmatprep.subr.mxu0 0.0
    %365 = vmatpush2.msra.mxu0 0.0
    %366 = vmatprep.subr.mxu0 0.0
    %367 = vmatpush2.msra.mxu0 0.0
    %368 = vmatprep.subr.mxu0 0.0
    %369 = vmatpush2.msra.mxu0 0.0
    %370 = vmatprep.subr.mxu0 0.0
    %371 = vmatpush2.msra.mxu0 0.0
    %372 = vmatprep.subr.mxu0 0.0
    %373 = vmatpush2.msra.mxu0 0.0
    %374 = vmatprep.subr.mxu0 0.0
    %375 = vmatpush2.msra.mxu0 0.0
    %376 = vmatprep.subr.mxu0 0.0
    %377 = vmatpush2.msra.mxu0 0.0
    %378 = vmatprep.subr.mxu0 0.0
    %379 = vmatpush2.msra.mxu0 0.0
    %380 = vmatprep.subr.mxu0 0.0
    %381 = vmatpush2.msra.mxu0 0.0
    %382 = vmatprep.subr.mxu0 0.0
    %383 = vmatpush2.msra.mxu0 0.0
    %384 = vmatprep.subr.mxu0 0.0
    %385 = vmatpush2.msra.mxu0 0.0
    %386 = vmatprep.mubr.f32.mxu0 0.0
    %387 = vmatmul.mubr.f32.gmra.mxu0 %v144
    %v388 = vpop.f32.mrf.mxu0
    %v389 = vadd.f32 0.0, %v388
    %v390 = vpop.f32.mrf.mxu0
    %391 = vdwg.mxu0
    %v392 = vadd.f32 %v319, %v389
    %v393 = vxor.u32 %v392, 2147483648
    %v394 = vmul.f32 %v393, 1.442695
    %v395 = vpow.pop %v394
    %v396 = vadd.f32 %v395, 1.0
    %v397 = vrcp.pop %v396
    %v398 = vmul.f32 1.0, %v397
    %v399 = vtanh.pop %v392
    %v400 = vmul.f32 %v398, 0.0
    %402 = vrot.lane.b32.xlu0 %v399, 64
    %v403 = vpop.permute.xlu0 %402
    %v405 = vmul.f32 %v398, %v403
    %407 = vrot.lane.b32.xlu0 %v405, 32
    %v408 = vpop.permute.xlu0 %407
    %v410 = vadd.f32 %v400, %v408
    %v411 = vtanh.pop %v410
    %413 = vrot.lane.b32.xlu0 %v411, 64
    %v414 = vpop.permute.xlu0 %413
    %v416 = vmul.f32 %v398, %v414
    %417 = vmatprep.subr.mxu0 0.0
    %418 = vmatpush1.msra.mxu0 0.0
    %419 = vmatprep.subr.mxu0 0.0
    %420 = vmatpush1.msra.mxu0 0.0
    %421 = vmatprep.subr.mxu0 0.0
    %422 = vmatpush1.msra.mxu0 0.0
    %423 = vmatprep.subr.mxu0 0.0
    %424 = vmatpush1.msra.mxu0 0.0
    %425 = vmatprep.subr.mxu0 0.0
    %426 = vmatpush1.msra.mxu0 0.0
    %427 = vmatprep.subr.mxu0 0.0
    %428 = vmatpush1.msra.mxu0 0.0
    %429 = vmatprep.subr.mxu0 0.0
    %430 = vmatpush1.msra.mxu0 0.0
    %431 = vmatprep.subr.mxu0 0.0
    %432 = vmatpush1.msra.mxu0 0.0
    %433 = vmatprep.subr.mxu0 0.0
    %434 = vmatpush1.msra.mxu0 0.0
    %435 = vmatprep.subr.mxu0 0.0
    %436 = vmatpush1.msra.mxu0 0.0
    %437 = vmatprep.subr.mxu0 0.0
    %438 = vmatpush1.msra.mxu0 0.0
    %439 = vmatprep.subr.mxu0 0.0
    %440 = vmatpush1.msra.mxu0 0.0
    %441 = vmatprep.subr.mxu0 0.0
    %442 = vmatpush1.msra.mxu0 %v41
    %443 = vmatprep.subr.mxu0 0.0
    %444 = vmatpush1.msra.mxu0 %v40
    %445 = vmatprep.subr.mxu0 0.0
    %446 = vmatpush1.msra.mxu0 %v39
    %447 = vmatprep.subr.mxu0 0.0
    %448 = vmatpush1.msra.mxu0 %v38
    %449 = vmatprep.subr.mxu0 0.0
    %450 = vmatpush2.msra.mxu0 0.0
    %451 = vmatprep.subr.mxu0 0.0
    %452 = vmatpush2.msra.mxu0 0.0
    %453 = vmatprep.subr.mxu0 0.0
    %454 = vmatpush2.msra.mxu0 0.0
    %455 = vmatprep.subr.mxu0 0.0
    %456 = vmatpush2.msra.mxu0 0.0
    %457 = vmatprep.subr.mxu0 0.0
    %458 = vmatpush2.msra.mxu0 0.0
    %459 = vmatprep.subr.mxu0 0.0
    %460 = vmatpush2.msra.mxu0 0.0
    %461 = vmatprep.subr.mxu0 0.0
    %462 = vmatpush2.msra.mxu0 0.0
    %463 = vmatprep.subr.mxu0 0.0
    %464 = vmatpush2.msra.mxu0 0.0
    %465 = vmatprep.subr.mxu0 0.0
    %466 = vmatpush2.msra.mxu0 0.0
    %467 = vmatprep.subr.mxu0 0.0
    %468 = vmatpush2.msra.mxu0 0.0
    %469 = vmatprep.subr.mxu0 0.0
    %470 = vmatpush2.msra.mxu0 0.0
    %471 = vmatprep.subr.mxu0 0.0
    %472 = vmatpush2.msra.mxu0 0.0
    %473 = vmatprep.subr.mxu0 0.0
    %474 = vmatpush2.msra.mxu0 0.0
    %475 = vmatprep.subr.mxu0 0.0
    %476 = vmatpush2.msra.mxu0 0.0
    %477 = vmatprep.subr.mxu0 0.0
    %478 = vmatpush2.msra.mxu0 0.0
    %479 = vmatprep.subr.mxu0 0.0
    %480 = vmatpush2.msra.mxu0 0.0
    %481 = vmatprep.mubr.f32.mxu0 0.0
    %482 = vmatmul.mubr.f32.gmra.mxu0 %v250
    %v483 = vpop.f32.mrf.mxu0
    %v484 = vadd.f32 0.0, %v483
    %v485 = vpop.f32.mrf.mxu0
    %486 = vdwg.mxu0
    %v488 = vrot.slane %v484, 6
    %v490 = vadd.f32 %v134, %v488
    %v491 = vxor.u32 %v490, 2147483648
    %v492 = vmul.f32 %v491, 1.442695
    %v493 = vpow.pop %v492
    %v494 = vadd.f32 %v493, 1.0
    %v495 = vrcp.pop %v494
    %v496 = vmul.f32 1.0, %v495
    %v497 = vtanh.pop %v490
    %v499 = vrot.slane %v234, 6
    %v501 = vmul.f32 %v496, %v499
    %503 = vrot.lane.b32.xlu0 %v497, 64
    %v504 = vpop.permute.xlu0 %503
    %v506 = vmul.f32 %v496, %v504
    %508 = vrot.lane.b32.xlu0 %v506, 32
    %v509 = vpop.permute.xlu0 %508
    %v511 = vadd.f32 %v501, %v509
    %v512 = vtanh.pop %v511
    %514 = vrot.lane.b32.xlu0 %v512, 64
    %v515 = vpop.permute.xlu0 %514
    %v517 = vmul.f32 %v496, %v515
    %v519 = vrot.slane %v517, 2
    %520 = vrot.lane.b32.xlu0 %v519, 32
    %v521 = vpop.permute.xlu0 %520
    %v522 = vsel %vm142, %v521, 0
    %524 = vmatprep.subr.mxu0 0.0
    %525 = vmatpush1.msra.mxu0 0.0
    %526 = vmatprep.subr.mxu0 0.0
    %527 = vmatpush1.msra.mxu0 0.0
    %528 = vmatprep.subr.mxu0 0.0
    %529 = vmatpush1.msra.mxu0 0.0
    %530 = vmatprep.subr.mxu0 0.0
    %531 = vmatpush1.msra.mxu0 0.0
    %532 = vmatprep.subr.mxu0 0.0
    %533 = vmatpush1.msra.mxu0 0.0
    %534 = vmatprep.subr.mxu0 0.0
    %535 = vmatpush1.msra.mxu0 0.0
    %536 = vmatprep.subr.mxu0 0.0
    %537 = vmatpush1.msra.mxu0 0.0
    %538 = vmatprep.subr.mxu0 0.0
    %539 = vmatpush1.msra.mxu0 0.0
    %540 = vmatprep.subr.mxu0 0.0
    %541 = vmatpush1.msra.mxu0 0.0
    %542 = vmatprep.subr.mxu0 0.0
    %543 = vmatpush1.msra.mxu0 0.0
    %544 = vmatprep.subr.mxu0 0.0
    %545 = vmatpush1.msra.mxu0 0.0
    %546 = vmatprep.subr.mxu0 0.0
    %547 = vmatpush1.msra.mxu0 0.0
    %548 = vmatprep.subr.mxu0 0.0
    %549 = vmatpush1.msra.mxu0 %v37
    %550 = vmatprep.subr.mxu0 0.0
    %551 = vmatpush1.msra.mxu0 %v36
    %552 = vmatprep.subr.mxu0 0.0
    %553 = vmatpush1.msra.mxu0 %v35
    %554 = vmatprep.subr.mxu0 0.0
    %555 = vmatpush1.msra.mxu0 %v34
    %556 = vmatprep.subr.mxu0 0.0
    %557 = vmatpush2.msra.mxu0 0.0
    %558 = vmatprep.subr.mxu0 0.0
    %559 = vmatpush2.msra.mxu0 0.0
    %560 = vmatprep.subr.mxu0 0.0
    %561 = vmatpush2.msra.mxu0 0.0
    %562 = vmatprep.subr.mxu0 0.0
    %563 = vmatpush2.msra.mxu0 0.0
    %564 = vmatprep.subr.mxu0 0.0
    %565 = vmatpush2.msra.mxu0 0.0
    %566 = vmatprep.subr.mxu0 0.0
    %567 = vmatpush2.msra.mxu0 0.0
    %568 = vmatprep.subr.mxu0 0.0
    %569 = vmatpush2.msra.mxu0 0.0
    %570 = vmatprep.subr.mxu0 0.0
    %571 = vmatpush2.msra.mxu0 0.0
    %572 = vmatprep.subr.mxu0 0.0
    %573 = vmatpush2.msra.mxu0 0.0
    %574 = vmatprep.subr.mxu0 0.0
    %575 = vmatpush2.msra.mxu0 0.0
    %576 = vmatprep.subr.mxu0 0.0
    %577 = vmatpush2.msra.mxu0 0.0
    %578 = vmatprep.subr.mxu0 0.0
    %579 = vmatpush2.msra.mxu0 0.0
    %580 = vmatprep.subr.mxu0 0.0
    %581 = vmatpush2.msra.mxu0 0.0
    %582 = vmatprep.subr.mxu0 0.0
    %583 = vmatpush2.msra.mxu0 0.0
    %584 = vmatprep.subr.mxu0 0.0
    %585 = vmatpush2.msra.mxu0 0.0
    %586 = vmatprep.subr.mxu0 0.0
    %587 = vmatpush2.msra.mxu0 0.0
    %588 = vmatprep.mubr.f32.mxu0 0.0
    %589 = vmatmul.mubr.f32.gmra.mxu0 %v522
    %v590 = vpop.f32.mrf.mxu0
    %v591 = vadd.f32 %v245, %v590
    %v592 = vpop.f32.mrf.mxu0
    %593 = vdwg.mxu0
    %595 = vrot.lane.b32.xlu0 %v416, 32
    %v596 = vpop.permute.xlu0 %595
    %v597 = vsel %vm142, %v596, 0
    %599 = vmatprep.subr.mxu0 0.0
    %600 = vmatpush1.msra.mxu0 0.0
    %601 = vmatprep.subr.mxu0 0.0
    %602 = vmatpush1.msra.mxu0 0.0
    %603 = vmatprep.subr.mxu0 0.0
    %604 = vmatpush1.msra.mxu0 0.0
    %605 = vmatprep.subr.mxu0 0.0
    %606 = vmatpush1.msra.mxu0 0.0
    %607 = vmatprep.subr.mxu0 0.0
    %608 = vmatpush1.msra.mxu0 0.0
    %609 = vmatprep.subr.mxu0 0.0
    %610 = vmatpush1.msra.mxu0 0.0
    %611 = vmatprep.subr.mxu0 0.0
    %612 = vmatpush1.msra.mxu0 0.0
    %613 = vmatprep.subr.mxu0 0.0
    %614 = vmatpush1.msra.mxu0 0.0
    %615 = vmatprep.subr.mxu0 0.0
    %616 = vmatpush1.msra.mxu0 0.0
    %617 = vmatprep.subr.mxu0 0.0
    %618 = vmatpush1.msra.mxu0 0.0
    %619 = vmatprep.subr.mxu0 0.0
    %620 = vmatpush1.msra.mxu0 0.0
    %621 = vmatprep.subr.mxu0 0.0
    %622 = vmatpush1.msra.mxu0 0.0
    %623 = vmatprep.subr.mxu0 0.0
    %624 = vmatpush1.msra.mxu0 %v45
    %625 = vmatprep.subr.mxu0 0.0
    %626 = vmatpush1.msra.mxu0 %v44
    %627 = vmatprep.subr.mxu0 0.0
    %628 = vmatpush1.msra.mxu0 %v43
    %629 = vmatprep.subr.mxu0 0.0
    %630 = vmatpush1.msra.mxu0 %v42
    %631 = vmatprep.subr.mxu0 0.0
    %632 = vmatpush2.msra.mxu0 0.0
    %633 = vmatprep.subr.mxu0 0.0
    %634 = vmatpush2.msra.mxu0 0.0
    %635 = vmatprep.subr.mxu0 0.0
    %636 = vmatpush2.msra.mxu0 0.0
    %637 = vmatprep.subr.mxu0 0.0
    %638 = vmatpush2.msra.mxu0 0.0
    %639 = vmatprep.subr.mxu0 0.0
    %640 = vmatpush2.msra.mxu0 0.0
    %641 = vmatprep.subr.mxu0 0.0
    %642 = vmatpush2.msra.mxu0 0.0
    %643 = vmatprep.subr.mxu0 0.0
    %644 = vmatpush2.msra.mxu0 0.0
    %645 = vmatprep.subr.mxu0 0.0
    %646 = vmatpush2.msra.mxu0 0.0
    %647 = vmatprep.subr.mxu0 0.0
    %648 = vmatpush2.msra.mxu0 0.0
    %649 = vmatprep.subr.mxu0 0.0
    %650 = vmatpush2.msra.mxu0 0.0
    %651 = vmatprep.subr.mxu0 0.0
    %652 = vmatpush2.msra.mxu0 0.0
    %653 = vmatprep.subr.mxu0 0.0
    %654 = vmatpush2.msra.mxu0 0.0
    %655 = vmatprep.subr.mxu0 0.0
    %656 = vmatpush2.msra.mxu0 0.0
    %657 = vmatprep.subr.mxu0 0.0
    %658 = vmatpush2.msra.mxu0 0.0
    %659 = vmatprep.subr.mxu0 0.0
    %660 = vmatpush2.msra.mxu0 0.0
    %661 = vmatprep.subr.mxu0 0.0
    %662 = vmatpush2.msra.mxu0 0.0
    %663 = vmatprep.mubr.f32.mxu0 0.0
    %664 = vmatmul.mubr.f32.gmra.mxu0 %v597
    %v665 = vpop.f32.mrf.mxu0
    %v666 = vadd.f32 0.0, %v665
    %v667 = vpop.f32.mrf.mxu0
    %668 = vdwg.mxu0
    %v669 = vadd.f32 %v591, %v666
    %v670 = vxor.u32 %v669, 2147483648
    %v671 = vmul.f32 %v670, 1.442695
    %v672 = vpow.pop %v671
    %v673 = vadd.f32 %v672, 1.0
    %v674 = vrcp.pop %v673
    %v675 = vmul.f32 1.0, %v674
    %v676 = vtanh.pop %v669
    %v677 = vmul.f32 %v675, %v410
    %679 = vrot.lane.b32.xlu0 %v676, 64
    %v680 = vpop.permute.xlu0 %679
    %v682 = vmul.f32 %v675, %v680
    %684 = vrot.lane.b32.xlu0 %v682, 32
    %v685 = vpop.permute.xlu0 %684
    %v687 = vadd.f32 %v677, %v685
    %v688 = vtanh.pop %v687
    %690 = vrot.lane.b32.xlu0 %v688, 64
    %v691 = vpop.permute.xlu0 %690
    %v693 = vmul.f32 %v675, %v691
    %694 = vmatprep.subr.mxu0 0.0
    %695 = vmatpush1.msra.mxu0 0.0
    %696 = vmatprep.subr.mxu0 0.0
    %697 = vmatpush1.msra.mxu0 0.0
    %698 = vmatprep.subr.mxu0 0.0
    %699 = vmatpush1.msra.mxu0 0.0
    %700 = vmatprep.subr.mxu0 0.0
    %701 = vmatpush1.msra.mxu0 0.0
    %702 = vmatprep.subr.mxu0 0.0
    %703 = vmatpush1.msra.mxu0 0.0
    %704 = vmatprep.subr.mxu0 0.0
    %705 = vmatpush1.msra.mxu0 0.0
    %706 = vmatprep.subr.mxu0 0.0
    %707 = vmatpush1.msra.mxu0 0.0
    %708 = vmatprep.subr.mxu0 0.0
    %709 = vmatpush1.msra.mxu0 0.0
    %710 = vmatprep.subr.mxu0 0.0
    %711 = vmatpush1.msra.mxu0 0.0
    %712 = vmatprep.subr.mxu0 0.0
    %713 = vmatpush1.msra.mxu0 0.0
    %714 = vmatprep.subr.mxu0 0.0
    %715 = vmatpush1.msra.mxu0 0.0
    %716 = vmatprep.subr.mxu0 0.0
    %717 = vmatpush1.msra.mxu0 0.0
    %718 = vmatprep.subr.mxu0 0.0
    %719 = vmatpush1.msra.mxu0 %v41
    %720 = vmatprep.subr.mxu0 0.0
    %721 = vmatpush1.msra.mxu0 %v40
    %722 = vmatprep.subr.mxu0 0.0
    %723 = vmatpush1.msra.mxu0 %v39
    %724 = vmatprep.subr.mxu0 0.0
    %725 = vmatpush1.msra.mxu0 %v38
    %726 = vmatprep.subr.mxu0 0.0
    %727 = vmatpush2.msra.mxu0 0.0
    %728 = vmatprep.subr.mxu0 0.0
    %729 = vmatpush2.msra.mxu0 0.0
    %730 = vmatprep.subr.mxu0 0.0
    %731 = vmatpush2.msra.mxu0 0.0
    %732 = vmatprep.subr.mxu0 0.0
    %733 = vmatpush2.msra.mxu0 0.0
    %734 = vmatprep.subr.mxu0 0.0
    %735 = vmatpush2.msra.mxu0 0.0
    %736 = vmatprep.subr.mxu0 0.0
    %737 = vmatpush2.msra.mxu0 0.0
    %738 = vmatprep.subr.mxu0 0.0
    %739 = vmatpush2.msra.mxu0 0.0
    %740 = vmatprep.subr.mxu0 0.0
    %741 = vmatpush2.msra.mxu0 0.0
    %742 = vmatprep.subr.mxu0 0.0
    %743 = vmatpush2.msra.mxu0 0.0
    %744 = vmatprep.subr.mxu0 0.0
    %745 = vmatpush2.msra.mxu0 0.0
    %746 = vmatprep.subr.mxu0 0.0
    %747 = vmatpush2.msra.mxu0 0.0
    %748 = vmatprep.subr.mxu0 0.0
    %749 = vmatpush2.msra.mxu0 0.0
    %750 = vmatprep.subr.mxu0 0.0
    %751 = vmatpush2.msra.mxu0 0.0
    %752 = vmatprep.subr.mxu0 0.0
    %753 = vmatpush2.msra.mxu0 0.0
    %754 = vmatprep.subr.mxu0 0.0
    %755 = vmatpush2.msra.mxu0 0.0
    %756 = vmatprep.subr.mxu0 0.0
    %757 = vmatpush2.msra.mxu0 0.0
    %758 = vmatprep.mubr.f32.mxu0 0.0
    %759 = vmatmul.mubr.f32.gmra.mxu0 %v522
    %v760 = vpop.f32.mrf.mxu0
    %v761 = vadd.f32 0.0, %v760
    %v762 = vpop.f32.mrf.mxu0
    %763 = vdwg.mxu0
    %v765 = vrot.slane %v761, 4
    %v767 = vadd.f32 %v134, %v765
    %v768 = vxor.u32 %v767, 2147483648
    %v769 = vmul.f32 %v768, 1.442695
    %v770 = vpow.pop %v769
    %v771 = vadd.f32 %v770, 1.0
    %v772 = vrcp.pop %v771
    %v773 = vmul.f32 1.0, %v772
    %v774 = vtanh.pop %v767
    %v776 = vrot.slane %v511, 6
    %v778 = vmul.f32 %v773, %v776
    %780 = vrot.lane.b32.xlu0 %v774, 64
    %v781 = vpop.permute.xlu0 %780
    %v783 = vmul.f32 %v773, %v781
    %785 = vrot.lane.b32.xlu0 %v783, 32
    %v786 = vpop.permute.xlu0 %785
    %v788 = vadd.f32 %v778, %v786
    %v789 = vtanh.pop %v788
    %791 = vrot.lane.b32.xlu0 %v789, 64
    %v792 = vpop.permute.xlu0 %791
    %v794 = vmul.f32 %v773, %v792
    %v796 = vrot.slane %v794, 4
    %797 = vrot.lane.b32.xlu0 %v796, 32
    %v798 = vpop.permute.xlu0 %797
    %v799 = vsel %vm142, %v798, 0
    %801 = vmatprep.subr.mxu0 0.0
    %802 = vmatpush1.msra.mxu0 0.0
    %803 = vmatprep.subr.mxu0 0.0
    %804 = vmatpush1.msra.mxu0 0.0
    %805 = vmatprep.subr.mxu0 0.0
    %806 = vmatpush1.msra.mxu0 0.0
    %807 = vmatprep.subr.mxu0 0.0
    %808 = vmatpush1.msra.mxu0 0.0
    %809 = vmatprep.subr.mxu0 0.0
    %810 = vmatpush1.msra.mxu0 0.0
    %811 = vmatprep.subr.mxu0 0.0
    %812 = vmatpush1.msra.mxu0 0.0
    %813 = vmatprep.subr.mxu0 0.0
    %814 = vmatpush1.msra.mxu0 0.0
    %815 = vmatprep.subr.mxu0 0.0
    %816 = vmatpush1.msra.mxu0 0.0
    %817 = vmatprep.subr.mxu0 0.0
    %818 = vmatpush1.msra.mxu0 0.0
    %819 = vmatprep.subr.mxu0 0.0
    %820 = vmatpush1.msra.mxu0 0.0
    %821 = vmatprep.subr.mxu0 0.0
    %822 = vmatpush1.msra.mxu0 0.0
    %823 = vmatprep.subr.mxu0 0.0
    %824 = vmatpush1.msra.mxu0 0.0
    %825 = vmatprep.subr.mxu0 0.0
    %826 = vmatpush1.msra.mxu0 %v37
    %827 = vmatprep.subr.mxu0 0.0
    %828 = vmatpush1.msra.mxu0 %v36
    %829 = vmatprep.subr.mxu0 0.0
    %830 = vmatpush1.msra.mxu0 %v35
    %831 = vmatprep.subr.mxu0 0.0
    %832 = vmatpush1.msra.mxu0 %v34
    %833 = vmatprep.subr.mxu0 0.0
    %834 = vmatpush2.msra.mxu0 0.0
    %835 = vmatprep.subr.mxu0 0.0
    %836 = vmatpush2.msra.mxu0 0.0
    %837 = vmatprep.subr.mxu0 0.0
    %838 = vmatpush2.msra.mxu0 0.0
    %839 = vmatprep.subr.mxu0 0.0
    %840 = vmatpush2.msra.mxu0 0.0
    %841 = vmatprep.subr.mxu0 0.0
    %842 = vmatpush2.msra.mxu0 0.0
    %843 = vmatprep.subr.mxu0 0.0
    %844 = vmatpush2.msra.mxu0 0.0
    %845 = vmatprep.subr.mxu0 0.0
    %846 = vmatpush2.msra.mxu0 0.0
    %847 = vmatprep.subr.mxu0 0.0
    %848 = vmatpush2.msra.mxu0 0.0
    %849 = vmatprep.subr.mxu0 0.0
    %850 = vmatpush2.msra.mxu0 0.0
    %851 = vmatprep.subr.mxu0 0.0
    %852 = vmatpush2.msra.mxu0 0.0
    %853 = vmatprep.subr.mxu0 0.0
    %854 = vmatpush2.msra.mxu0 0.0
    %855 = vmatprep.subr.mxu0 0.0
    %856 = vmatpush2.msra.mxu0 0.0
    %857 = vmatprep.subr.mxu0 0.0
    %858 = vmatpush2.msra.mxu0 0.0
    %859 = vmatprep.subr.mxu0 0.0
    %860 = vmatpush2.msra.mxu0 0.0
    %861 = vmatprep.subr.mxu0 0.0
    %862 = vmatpush2.msra.mxu0 0.0
    %863 = vmatprep.subr.mxu0 0.0
    %864 = vmatpush2.msra.mxu0 0.0
    %865 = vmatprep.mubr.f32.mxu0 0.0
    %866 = vmatmul.mubr.f32.gmra.mxu0 %v799
    %v867 = vpop.f32.mrf.mxu0
    %v868 = vadd.f32 %v245, %v867
    %v869 = vpop.f32.mrf.mxu0
    %870 = vdwg.mxu0
    %872 = vrot.lane.b32.xlu0 %v693, 32
    %v873 = vpop.permute.xlu0 %872
    %v874 = vsel %vm142, %v873, 0
    %876 = vmatprep.subr.mxu0 0.0
    %877 = vmatpush1.msra.mxu0 0.0
    %878 = vmatprep.subr.mxu0 0.0
    %879 = vmatpush1.msra.mxu0 0.0
    %880 = vmatprep.subr.mxu0 0.0
    %881 = vmatpush1.msra.mxu0 0.0
    %882 = vmatprep.subr.mxu0 0.0
    %883 = vmatpush1.msra.mxu0 0.0
    %884 = vmatprep.subr.mxu0 0.0
    %885 = vmatpush1.msra.mxu0 0.0
    %886 = vmatprep.subr.mxu0 0.0
    %887 = vmatpush1.msra.mxu0 0.0
    %888 = vmatprep.subr.mxu0 0.0
    %889 = vmatpush1.msra.mxu0 0.0
    %890 = vmatprep.subr.mxu0 0.0
    %891 = vmatpush1.msra.mxu0 0.0
    %892 = vmatprep.subr.mxu0 0.0
    %893 = vmatpush1.msra.mxu0 0.0
    %894 = vmatprep.subr.mxu0 0.0
    %895 = vmatpush1.msra.mxu0 0.0
    %896 = vmatprep.subr.mxu0 0.0
    %897 = vmatpush1.msra.mxu0 0.0
    %898 = vmatprep.subr.mxu0 0.0
    %899 = vmatpush1.msra.mxu0 0.0
    %900 = vmatprep.subr.mxu0 0.0
    %901 = vmatpush1.msra.mxu0 %v45
    %902 = vmatprep.subr.mxu0 0.0
    %903 = vmatpush1.msra.mxu0 %v44
    %904 = vmatprep.subr.mxu0 0.0
    %905 = vmatpush1.msra.mxu0 %v43
    %906 = vmatprep.subr.mxu0 0.0
    %907 = vmatpush1.msra.mxu0 %v42
    %908 = vmatprep.subr.mxu0 0.0
    %909 = vmatpush2.msra.mxu0 0.0
    %910 = vmatprep.subr.mxu0 0.0
    %911 = vmatpush2.msra.mxu0 0.0
    %912 = vmatprep.subr.mxu0 0.0
    %913 = vmatpush2.msra.mxu0 0.0
    %914 = vmatprep.subr.mxu0 0.0
    %915 = vmatpush2.msra.mxu0 0.0
    %916 = vmatprep.subr.mxu0 0.0
    %917 = vmatpush2.msra.mxu0 0.0
    %918 = vmatprep.subr.mxu0 0.0
    %919 = vmatpush2.msra.mxu0 0.0
    %920 = vmatprep.subr.mxu0 0.0
    %921 = vmatpush2.msra.mxu0 0.0
    %922 = vmatprep.subr.mxu0 0.0
    %923 = vmatpush2.msra.mxu0 0.0
    %924 = vmatprep.subr.mxu0 0.0
    %925 = vmatpush2.msra.mxu0 0.0
    %926 = vmatprep.subr.mxu0 0.0
    %927 = vmatpush2.msra.mxu0 0.0
    %928 = vmatprep.subr.mxu0 0.0
    %929 = vmatpush2.msra.mxu0 0.0
    %930 = vmatprep.subr.mxu0 0.0
    %931 = vmatpush2.msra.mxu0 0.0
    %932 = vmatprep.subr.mxu0 0.0
    %933 = vmatpush2.msra.mxu0 0.0
    %934 = vmatprep.subr.mxu0 0.0
    %935 = vmatpush2.msra.mxu0 0.0
    %936 = vmatprep.subr.mxu0 0.0
    %937 = vmatpush2.msra.mxu0 0.0
    %938 = vmatprep.subr.mxu0 0.0
    %939 = vmatpush2.msra.mxu0 0.0
    %940 = vmatprep.mubr.f32.mxu0 0.0
    %941 = vmatmul.mubr.f32.gmra.mxu0 %v874
    %v942 = vpop.f32.mrf.mxu0
    %v943 = vadd.f32 0.0, %v942
    %v944 = vpop.f32.mrf.mxu0
    %945 = vdwg.mxu0
    %v946 = vadd.f32 %v868, %v943
    %v947 = vxor.u32 %v946, 2147483648
    %v948 = vmul.f32 %v947, 1.442695
    %v949 = vpow.pop %v948
    %v950 = vadd.f32 %v949, 1.0
    %v951 = vrcp.pop %v950
    %v952 = vmul.f32 1.0, %v951
    %v953 = vtanh.pop %v946
    %v954 = vmul.f32 %v952, %v687
    %956 = vrot.lane.b32.xlu0 %v953, 64
    %v957 = vpop.permute.xlu0 %956
    %v959 = vmul.f32 %v952, %v957
    %961 = vrot.lane.b32.xlu0 %v959, 32
    %v962 = vpop.permute.xlu0 %961
    %v964 = vadd.f32 %v954, %v962
    %v965 = vtanh.pop %v964
    %967 = vrot.lane.b32.xlu0 %v965, 64
    %v968 = vpop.permute.xlu0 %967
    %v970 = vmul.f32 %v952, %v968
    %971 = vmatprep.subr.mxu0 0.0
    %972 = vmatpush1.msra.mxu0 0.0
    %973 = vmatprep.subr.mxu0 0.0
    %974 = vmatpush1.msra.mxu0 0.0
    %975 = vmatprep.subr.mxu0 0.0
    %976 = vmatpush1.msra.mxu0 0.0
    %977 = vmatprep.subr.mxu0 0.0
    %978 = vmatpush1.msra.mxu0 0.0
    %979 = vmatprep.subr.mxu0 0.0
    %980 = vmatpush1.msra.mxu0 0.0
    %981 = vmatprep.subr.mxu0 0.0
    %982 = vmatpush1.msra.mxu0 0.0
    %983 = vmatprep.subr.mxu0 0.0
    %984 = vmatpush1.msra.mxu0 0.0
    %985 = vmatprep.subr.mxu0 0.0
    %986 = vmatpush1.msra.mxu0 0.0
    %987 = vmatprep.subr.mxu0 0.0
    %988 = vmatpush1.msra.mxu0 0.0
    %989 = vmatprep.subr.mxu0 0.0
    %990 = vmatpush1.msra.mxu0 0.0
    %991 = vmatprep.subr.mxu0 0.0
    %992 = vmatpush1.msra.mxu0 0.0
    %993 = vmatprep.subr.mxu0 0.0
    %994 = vmatpush1.msra.mxu0 0.0
    %995 = vmatprep.subr.mxu0 0.0
    %996 = vmatpush1.msra.mxu0 %v41
    %997 = vmatprep.subr.mxu0 0.0
    %998 = vmatpush1.msra.mxu0 %v40
    %999 = vmatprep.subr.mxu0 0.0
    %1000 = vmatpush1.msra.mxu0 %v39
    %1001 = vmatprep.subr.mxu0 0.0
    %1002 = vmatpush1.msra.mxu0 %v38
    %1003 = vmatprep.subr.mxu0 0.0
    %1004 = vmatpush2.msra.mxu0 0.0
    %1005 = vmatprep.subr.mxu0 0.0
    %1006 = vmatpush2.msra.mxu0 0.0
    %1007 = vmatprep.subr.mxu0 0.0
    %1008 = vmatpush2.msra.mxu0 0.0
    %1009 = vmatprep.subr.mxu0 0.0
    %1010 = vmatpush2.msra.mxu0 0.0
    %1011 = vmatprep.subr.mxu0 0.0
    %1012 = vmatpush2.msra.mxu0 0.0
    %1013 = vmatprep.subr.mxu0 0.0
    %1014 = vmatpush2.msra.mxu0 0.0
    %1015 = vmatprep.subr.mxu0 0.0
    %1016 = vmatpush2.msra.mxu0 0.0
    %1017 = vmatprep.subr.mxu0 0.0
    %1018 = vmatpush2.msra.mxu0 0.0
    %1019 = vmatprep.subr.mxu0 0.0
    %1020 = vmatpush2.msra.mxu0 0.0
    %1021 = vmatprep.subr.mxu0 0.0
    %1022 = vmatpush2.msra.mxu0 0.0
    %1023 = vmatprep.subr.mxu0 0.0
    %1024 = vmatpush2.msra.mxu0 0.0
    %1025 = vmatprep.subr.mxu0 0.0
    %1026 = vmatpush2.msra.mxu0 0.0
    %1027 = vmatprep.subr.mxu0 0.0
    %1028 = vmatpush2.msra.mxu0 0.0
    %1029 = vmatprep.subr.mxu0 0.0
    %1030 = vmatpush2.msra.mxu0 0.0
    %1031 = vmatprep.subr.mxu0 0.0
    %1032 = vmatpush2.msra.mxu0 0.0
    %1033 = vmatprep.subr.mxu0 0.0
    %1034 = vmatpush2.msra.mxu0 0.0
    %1035 = vmatprep.mubr.f32.mxu0 0.0
    %1036 = vmatmul.mubr.f32.gmra.mxu0 %v799
    %v1037 = vpop.f32.mrf.mxu0
    %v1038 = vadd.f32 0.0, %v1037
    %v1039 = vpop.f32.mrf.mxu0
    %1040 = vdwg.mxu0
    %v1042 = vrot.slane %v1038, 2
    %v1044 = vadd.f32 %v134, %v1042
    %v1045 = vxor.u32 %v1044, 2147483648
    %v1046 = vmul.f32 %v1045, 1.442695
    %v1047 = vpow.pop %v1046
    %v1048 = vadd.f32 %v1047, 1.0
    %v1049 = vrcp.pop %v1048
    %v1050 = vmul.f32 1.0, %v1049
    %v1051 = vtanh.pop %v1044
    %v1053 = vrot.slane %v788, 6
    %v1055 = vmul.f32 %v1050, %v1053
    %1057 = vrot.lane.b32.xlu0 %v1051, 64
    %v1058 = vpop.permute.xlu0 %1057
    %v1060 = vmul.f32 %v1050, %v1058
    %1062 = vrot.lane.b32.xlu0 %v1060, 32
    %v1063 = vpop.permute.xlu0 %1062
    %v1065 = vadd.f32 %v1055, %v1063
    %v1066 = vtanh.pop %v1065
    %1068 = vrot.lane.b32.xlu0 %v1066, 64
    %v1069 = vpop.permute.xlu0 %1068
    %v1071 = vmul.f32 %v1050, %v1069
    %v1073 = vrot.slane %v1071, 6
    %1074 = vrot.lane.b32.xlu0 %v1073, 32
    %v1075 = vpop.permute.xlu0 %1074
    %v1076 = vsel %vm142, %v1075, 0
    %1078 = vmatprep.subr.mxu0 0.0
    %1079 = vmatpush1.msra.mxu0 0.0
    %1080 = vmatprep.subr.mxu0 0.0
    %1081 = vmatpush1.msra.mxu0 0.0
    %1082 = vmatprep.subr.mxu0 0.0
    %1083 = vmatpush1.msra.mxu0 0.0
    %1084 = vmatprep.subr.mxu0 0.0
    %1085 = vmatpush1.msra.mxu0 0.0
    %1086 = vmatprep.subr.mxu0 0.0
    %1087 = vmatpush1.msra.mxu0 0.0
    %1088 = vmatprep.subr.mxu0 0.0
    %1089 = vmatpush1.msra.mxu0 0.0
    %1090 = vmatprep.subr.mxu0 0.0
    %1091 = vmatpush1.msra.mxu0 0.0
    %1092 = vmatprep.subr.mxu0 0.0
    %1093 = vmatpush1.msra.mxu0 0.0
    %1094 = vmatprep.subr.mxu0 0.0
    %1095 = vmatpush1.msra.mxu0 0.0
    %1096 = vmatprep.subr.mxu0 0.0
    %1097 = vmatpush1.msra.mxu0 0.0
    %1098 = vmatprep.subr.mxu0 0.0
    %1099 = vmatpush1.msra.mxu0 0.0
    %1100 = vmatprep.subr.mxu0 0.0
    %1101 = vmatpush1.msra.mxu0 0.0
    %1102 = vmatprep.subr.mxu0 0.0
    %1103 = vmatpush1.msra.mxu0 %v37
    %1104 = vmatprep.subr.mxu0 0.0
    %1105 = vmatpush1.msra.mxu0 %v36
    %1106 = vmatprep.subr.mxu0 0.0
    %1107 = vmatpush1.msra.mxu0 %v35
    %1108 = vmatprep.subr.mxu0 0.0
    %1109 = vmatpush1.msra.mxu0 %v34
    %1110 = vmatprep.subr.mxu0 0.0
    %1111 = vmatpush2.msra.mxu0 0.0
    %1112 = vmatprep.subr.mxu0 0.0
    %1113 = vmatpush2.msra.mxu0 0.0
    %1114 = vmatprep.subr.mxu0 0.0
    %1115 = vmatpush2.msra.mxu0 0.0
    %1116 = vmatprep.subr.mxu0 0.0
    %1117 = vmatpush2.msra.mxu0 0.0
    %1118 = vmatprep.subr.mxu0 0.0
    %1119 = vmatpush2.msra.mxu0 0.0
    %1120 = vmatprep.subr.mxu0 0.0
    %1121 = vmatpush2.msra.mxu0 0.0
    %1122 = vmatprep.subr.mxu0 0.0
    %1123 = vmatpush2.msra.mxu0 0.0
    %1124 = vmatprep.subr.mxu0 0.0
    %1125 = vmatpush2.msra.mxu0 0.0
    %1126 = vmatprep.subr.mxu0 0.0
    %1127 = vmatpush2.msra.mxu0 0.0
    %1128 = vmatprep.subr.mxu0 0.0
    %1129 = vmatpush2.msra.mxu0 0.0
    %1130 = vmatprep.subr.mxu0 0.0
    %1131 = vmatpush2.msra.mxu0 0.0
    %1132 = vmatprep.subr.mxu0 0.0
    %1133 = vmatpush2.msra.mxu0 0.0
    %1134 = vmatprep.subr.mxu0 0.0
    %1135 = vmatpush2.msra.mxu0 0.0
    %1136 = vmatprep.subr.mxu0 0.0
    %1137 = vmatpush2.msra.mxu0 0.0
    %1138 = vmatprep.subr.mxu0 0.0
    %1139 = vmatpush2.msra.mxu0 0.0
    %1140 = vmatprep.subr.mxu0 0.0
    %1141 = vmatpush2.msra.mxu0 0.0
    %1142 = vmatprep.mubr.f32.mxu0 0.0
    %1143 = vmatmul.mubr.f32.gmra.mxu0 %v1076
    %v1144 = vpop.f32.mrf.mxu0
    %v1145 = vadd.f32 %v245, %v1144
    %v1146 = vpop.f32.mrf.mxu0
    %1147 = vdwg.mxu0
    %1149 = vrot.lane.b32.xlu0 %v970, 32
    %v1150 = vpop.permute.xlu0 %1149
    %v1151 = vsel %vm142, %v1150, 0
    %1153 = vmatprep.subr.mxu0 0.0
    %1154 = vmatpush1.msra.mxu0 0.0
    %1155 = vmatprep.subr.mxu0 0.0
    %1156 = vmatpush1.msra.mxu0 0.0
    %1157 = vmatprep.subr.mxu0 0.0
    %1158 = vmatpush1.msra.mxu0 0.0
    %1159 = vmatprep.subr.mxu0 0.0
    %1160 = vmatpush1.msra.mxu0 0.0
    %1161 = vmatprep.subr.mxu0 0.0
    %1162 = vmatpush1.msra.mxu0 0.0
    %1163 = vmatprep.subr.mxu0 0.0
    %1164 = vmatpush1.msra.mxu0 0.0
    %1165 = vmatprep.subr.mxu0 0.0
    %1166 = vmatpush1.msra.mxu0 0.0
    %1167 = vmatprep.subr.mxu0 0.0
    %1168 = vmatpush1.msra.mxu0 0.0
    %1169 = vmatprep.subr.mxu0 0.0
    %1170 = vmatpush1.msra.mxu0 0.0
    %1171 = vmatprep.subr.mxu0 0.0
    %1172 = vmatpush1.msra.mxu0 0.0
    %1173 = vmatprep.subr.mxu0 0.0
    %1174 = vmatpush1.msra.mxu0 0.0
    %1175 = vmatprep.subr.mxu0 0.0
    %1176 = vmatpush1.msra.mxu0 0.0
    %1177 = vmatprep.subr.mxu0 0.0
    %1178 = vmatpush1.msra.mxu0 %v45
    %1179 = vmatprep.subr.mxu0 0.0
    %1180 = vmatpush1.msra.mxu0 %v44
    %1181 = vmatprep.subr.mxu0 0.0
    %1182 = vmatpush1.msra.mxu0 %v43
    %1183 = vmatprep.subr.mxu0 0.0
    %1184 = vmatpush1.msra.mxu0 %v42
    %1185 = vmatprep.subr.mxu0 0.0
    %1186 = vmatpush2.msra.mxu0 0.0
    %1187 = vmatprep.subr.mxu0 0.0
    %1188 = vmatpush2.msra.mxu0 0.0
    %1189 = vmatprep.subr.mxu0 0.0
    %1190 = vmatpush2.msra.mxu0 0.0
    %1191 = vmatprep.subr.mxu0 0.0
    %1192 = vmatpush2.msra.mxu0 0.0
    %1193 = vmatprep.subr.mxu0 0.0
    %1194 = vmatpush2.msra.mxu0 0.0
    %1195 = vmatprep.subr.mxu0 0.0
    %1196 = vmatpush2.msra.mxu0 0.0
    %1197 = vmatprep.subr.mxu0 0.0
    %1198 = vmatpush2.msra.mxu0 0.0
    %1199 = vmatprep.subr.mxu0 0.0
    %1200 = vmatpush2.msra.mxu0 0.0
    %1201 = vmatprep.subr.mxu0 0.0
    %1202 = vmatpush2.msra.mxu0 0.0
    %1203 = vmatprep.subr.mxu0 0.0
    %1204 = vmatpush2.msra.mxu0 0.0
    %1205 = vmatprep.subr.mxu0 0.0
    %1206 = vmatpush2.msra.mxu0 0.0
    %1207 = vmatprep.subr.mxu0 0.0
    %1208 = vmatpush2.msra.mxu0 0.0
    %1209 = vmatprep.subr.mxu0 0.0
    %1210 = vmatpush2.msra.mxu0 0.0
    %1211 = vmatprep.subr.mxu0 0.0
    %1212 = vmatpush2.msra.mxu0 0.0
    %1213 = vmatprep.subr.mxu0 0.0
    %1214 = vmatpush2.msra.mxu0 0.0
    %1215 = vmatprep.subr.mxu0 0.0
    %1216 = vmatpush2.msra.mxu0 0.0
    %1217 = vmatprep.mubr.f32.mxu0 0.0
    %1218 = vmatmul.mubr.f32.gmra.mxu0 %v1151
    %v1219 = vpop.f32.mrf.mxu0
    %v1220 = vadd.f32 0.0, %v1219
    %v1221 = vpop.f32.mrf.mxu0
    %1222 = vdwg.mxu0
    %v1223 = vadd.f32 %v1145, %v1220
    %v1224 = vxor.u32 %v1223, 2147483648
    %v1225 = vmul.f32 %v1224, 1.442695
    %v1226 = vpow.pop %v1225
    %v1227 = vadd.f32 %v1226, 1.0
    %v1228 = vrcp.pop %v1227
    %v1229 = vmul.f32 1.0, %v1228
    %v1230 = vtanh.pop %v1223
    %v1231 = vmul.f32 %v1229, %v964
    %1233 = vrot.lane.b32.xlu0 %v1230, 64
    %v1234 = vpop.permute.xlu0 %1233
    %v1236 = vmul.f32 %v1229, %v1234
    %1238 = vrot.lane.b32.xlu0 %v1236, 32
    %v1239 = vpop.permute.xlu0 %1238
    %v1241 = vadd.f32 %v1231, %v1239
    %v1242 = vtanh.pop %v1241
    %1244 = vrot.lane.b32.xlu0 %v1242, 64
    %v1245 = vpop.permute.xlu0 %1244
    %v1247 = vmul.f32 %v1229, %v1245
    %1248 = vmatprep.subr.mxu0 0.0
    %1249 = vmatpush1.msra.mxu0 0.0
    %1250 = vmatprep.subr.mxu0 0.0
    %1251 = vmatpush1.msra.mxu0 0.0
    %1252 = vmatprep.subr.mxu0 0.0
    %1253 = vmatpush1.msra.mxu0 0.0
    %1254 = vmatprep.subr.mxu0 0.0
    %1255 = vmatpush1.msra.mxu0 0.0
    %1256 = vmatprep.subr.mxu0 0.0
    %1257 = vmatpush1.msra.mxu0 0.0
    %1258 = vmatprep.subr.mxu0 0.0
    %1259 = vmatpush1.msra.mxu0 0.0
    %1260 = vmatprep.subr.mxu0 0.0
    %1261 = vmatpush1.msra.mxu0 0.0
    %1262 = vmatprep.subr.mxu0 0.0
    %1263 = vmatpush1.msra.mxu0 0.0
    %1264 = vmatprep.subr.mxu0 0.0
    %1265 = vmatpush1.msra.mxu0 0.0
    %1266 = vmatprep.subr.mxu0 0.0
    %1267 = vmatpush1.msra.mxu0 0.0
    %1268 = vmatprep.subr.mxu0 0.0
    %1269 = vmatpush1.msra.mxu0 0.0
    %1270 = vmatprep.subr.mxu0 0.0
    %1271 = vmatpush1.msra.mxu0 0.0
    %1272 = vmatprep.subr.mxu0 0.0
    %1273 = vmatpush1.msra.mxu0 %v41
    %1274 = vmatprep.subr.mxu0 0.0
    %1275 = vmatpush1.msra.mxu0 %v40
    %1276 = vmatprep.subr.mxu0 0.0
    %1277 = vmatpush1.msra.mxu0 %v39
    %1278 = vmatprep.subr.mxu0 0.0
    %1279 = vmatpush1.msra.mxu0 %v38
    %1280 = vmatprep.subr.mxu0 0.0
    %1281 = vmatpush2.msra.mxu0 0.0
    %1282 = vmatprep.subr.mxu0 0.0
    %1283 = vmatpush2.msra.mxu0 0.0
    %1284 = vmatprep.subr.mxu0 0.0
    %1285 = vmatpush2.msra.mxu0 0.0
    %1286 = vmatprep.subr.mxu0 0.0
    %1287 = vmatpush2.msra.mxu0 0.0
    %1288 = vmatprep.subr.mxu0 0.0
    %1289 = vmatpush2.msra.mxu0 0.0
    %1290 = vmatprep.subr.mxu0 0.0
    %1291 = vmatpush2.msra.mxu0 0.0
    %1292 = vmatprep.subr.mxu0 0.0
    %1293 = vmatpush2.msra.mxu0 0.0
    %1294 = vmatprep.subr.mxu0 0.0
    %1295 = vmatpush2.msra.mxu0 0.0
    %1296 = vmatprep.subr.mxu0 0.0
    %1297 = vmatpush2.msra.mxu0 0.0
    %1298 = vmatprep.subr.mxu0 0.0
    %1299 = vmatpush2.msra.mxu0 0.0
    %1300 = vmatprep.subr.mxu0 0.0
    %1301 = vmatpush2.msra.mxu0 0.0
    %1302 = vmatprep.subr.mxu0 0.0
    %1303 = vmatpush2.msra.mxu0 0.0
    %1304 = vmatprep.subr.mxu0 0.0
    %1305 = vmatpush2.msra.mxu0 0.0
    %1306 = vmatprep.subr.mxu0 0.0
    %1307 = vmatpush2.msra.mxu0 0.0
    %1308 = vmatprep.subr.mxu0 0.0
    %1309 = vmatpush2.msra.mxu0 0.0
    %1310 = vmatprep.subr.mxu0 0.0
    %1311 = vmatpush2.msra.mxu0 0.0
    %1312 = vmatprep.mubr.f32.mxu0 0.0
    %1313 = vmatmul.mubr.f32.gmra.mxu0 %v1076
    %v1314 = vpop.f32.mrf.mxu0
    %v1315 = vadd.f32 0.0, %v1314
    %v1316 = vpop.f32.mrf.mxu0
    %1317 = vdwg.mxu0
    %v1318 = vadd.f32 %v139, %v1315
    %v1319 = vxor.u32 %v1318, 2147483648
    %v1320 = vmul.f32 %v1319, 1.442695
    %v1321 = vpow.pop %v1320
    %v1322 = vadd.f32 %v1321, 1.0
    %v1323 = vrcp.pop %v1322
    %v1324 = vmul.f32 1.0, %v1323
    %v1325 = vtanh.pop %v1318
    %v1327 = vrot.slane %v1065, 6
    %v1329 = vmul.f32 %v1324, %v1327
    %1331 = vrot.lane.b32.xlu0 %v1325, 64
    %v1332 = vpop.permute.xlu0 %1331
    %v1334 = vmul.f32 %v1324, %v1332
    %1336 = vrot.lane.b32.xlu0 %v1334, 32
    %v1337 = vpop.permute.xlu0 %1336
    %v1339 = vadd.f32 %v1329, %v1337
    %v1340 = vtanh.pop %v1339
    %1342 = vrot.lane.b32.xlu0 %v1340, 64
    %v1343 = vpop.permute.xlu0 %1342
    %v1345 = vmul.f32 %v1324, %v1343
    %1347 = vrot.lane.b32.xlu0 %v1345, 32
    %v1348 = vpop.permute.xlu0 %1347
    %v1349 = vsel %vm142, %v1348, 0
    %1351 = vmatprep.subr.mxu0 0.0
    %1352 = vmatpush1.msra.mxu0 0.0
    %1353 = vmatprep.subr.mxu0 0.0
    %1354 = vmatpush1.msra.mxu0 0.0
    %1355 = vmatprep.subr.mxu0 0.0
    %1356 = vmatpush1.msra.mxu0 0.0
    %1357 = vmatprep.subr.mxu0 0.0
    %1358 = vmatpush1.msra.mxu0 0.0
    %1359 = vmatprep.subr.mxu0 0.0
    %1360 = vmatpush1.msra.mxu0 0.0
    %1361 = vmatprep.subr.mxu0 0.0
    %1362 = vmatpush1.msra.mxu0 0.0
    %1363 = vmatprep.subr.mxu0 0.0
    %1364 = vmatpush1.msra.mxu0 0.0
    %1365 = vmatprep.subr.mxu0 0.0
    %1366 = vmatpush1.msra.mxu0 0.0
    %1367 = vmatprep.subr.mxu0 0.0
    %1368 = vmatpush1.msra.mxu0 0.0
    %1369 = vmatprep.subr.mxu0 0.0
    %1370 = vmatpush1.msra.mxu0 0.0
    %1371 = vmatprep.subr.mxu0 0.0
    %1372 = vmatpush1.msra.mxu0 0.0
    %1373 = vmatprep.subr.mxu0 0.0
    %1374 = vmatpush1.msra.mxu0 0.0
    %1375 = vmatprep.subr.mxu0 0.0
    %1376 = vmatpush1.msra.mxu0 %v37
    %1377 = vmatprep.subr.mxu0 0.0
    %1378 = vmatpush1.msra.mxu0 %v36
    %1379 = vmatprep.subr.mxu0 0.0
    %1380 = vmatpush1.msra.mxu0 %v35
    %1381 = vmatprep.subr.mxu0 0.0
    %1382 = vmatpush1.msra.mxu0 %v34
    %1383 = vmatprep.subr.mxu0 0.0
    %1384 = vmatpush2.msra.mxu0 0.0
    %1385 = vmatprep.subr.mxu0 0.0
    %1386 = vmatpush2.msra.mxu0 0.0
    %1387 = vmatprep.subr.mxu0 0.0
    %1388 = vmatpush2.msra.mxu0 0.0
    %1389 = vmatprep.subr.mxu0 0.0
    %1390 = vmatpush2.msra.mxu0 0.0
    %1391 = vmatprep.subr.mxu0 0.0
    %1392 = vmatpush2.msra.mxu0 0.0
    %1393 = vmatprep.subr.mxu0 0.0
    %1394 = vmatpush2.msra.mxu0 0.0
    %1395 = vmatprep.subr.mxu0 0.0
    %1396 = vmatpush2.msra.mxu0 0.0
    %1397 = vmatprep.subr.mxu0 0.0
    %1398 = vmatpush2.msra.mxu0 0.0
    %1399 = vmatprep.subr.mxu0 0.0
    %1400 = vmatpush2.msra.mxu0 0.0
    %1401 = vmatprep.subr.mxu0 0.0
    %1402 = vmatpush2.msra.mxu0 0.0
    %1403 = vmatprep.subr.mxu0 0.0
    %1404 = vmatpush2.msra.mxu0 0.0
    %1405 = vmatprep.subr.mxu0 0.0
    %1406 = vmatpush2.msra.mxu0 0.0
    %1407 = vmatprep.subr.mxu0 0.0
    %1408 = vmatpush2.msra.mxu0 0.0
    %1409 = vmatprep.subr.mxu0 0.0
    %1410 = vmatpush2.msra.mxu0 0.0
    %1411 = vmatprep.subr.mxu0 0.0
    %1412 = vmatpush2.msra.mxu0 0.0
    %1413 = vmatprep.subr.mxu0 0.0
    %1414 = vmatpush2.msra.mxu0 0.0
    %1415 = vmatprep.mubr.f32.mxu0 0.0
    %1416 = vmatmul.mubr.f32.gmra.mxu0 %v1349
    %v1417 = vpop.f32.mrf.mxu0
    %v1418 = vadd.f32 %v245, %v1417
    %v1419 = vpop.f32.mrf.mxu0
    %1420 = vdwg.mxu0
    %1422 = vrot.lane.b32.xlu0 %v1247, 32
    %v1423 = vpop.permute.xlu0 %1422
    %v1424 = vsel %vm142, %v1423, 0
    %1426 = vmatprep.subr.mxu0 0.0
    %1427 = vmatpush1.msra.mxu0 0.0
    %1428 = vmatprep.subr.mxu0 0.0
    %1429 = vmatpush1.msra.mxu0 0.0
    %1430 = vmatprep.subr.mxu0 0.0
    %1431 = vmatpush1.msra.mxu0 0.0
    %1432 = vmatprep.subr.mxu0 0.0
    %1433 = vmatpush1.msra.mxu0 0.0
    %1434 = vmatprep.subr.mxu0 0.0
    %1435 = vmatpush1.msra.mxu0 0.0
    %1436 = vmatprep.subr.mxu0 0.0
    %1437 = vmatpush1.msra.mxu0 0.0
    %1438 = vmatprep.subr.mxu0 0.0
    %1439 = vmatpush1.msra.mxu0 0.0
    %1440 = vmatprep.subr.mxu0 0.0
    %1441 = vmatpush1.msra.mxu0 0.0
    %1442 = vmatprep.subr.mxu0 0.0
    %1443 = vmatpush1.msra.mxu0 0.0
    %1444 = vmatprep.subr.mxu0 0.0
    %1445 = vmatpush1.msra.mxu0 0.0
    %1446 = vmatprep.subr.mxu0 0.0
    %1447 = vmatpush1.msra.mxu0 0.0
    %1448 = vmatprep.subr.mxu0 0.0
    %1449 = vmatpush1.msra.mxu0 0.0
    %1450 = vmatprep.subr.mxu0 0.0
    %1451 = vmatpush1.msra.mxu0 %v45
    %1452 = vmatprep.subr.mxu0 0.0
    %1453 = vmatpush1.msra.mxu0 %v44
    %1454 = vmatprep.subr.mxu0 0.0
    %1455 = vmatpush1.msra.mxu0 %v43
    %1456 = vmatprep.subr.mxu0 0.0
    %1457 = vmatpush1.msra.mxu0 %v42
    %1458 = vmatprep.subr.mxu0 0.0
    %1459 = vmatpush2.msra.mxu0 0.0
    %1460 = vmatprep.subr.mxu0 0.0
    %1461 = vmatpush2.msra.mxu0 0.0
    %1462 = vmatprep.subr.mxu0 0.0
    %1463 = vmatpush2.msra.mxu0 0.0
    %1464 = vmatprep.subr.mxu0 0.0
    %1465 = vmatpush2.msra.mxu0 0.0
    %1466 = vmatprep.subr.mxu0 0.0
    %1467 = vmatpush2.msra.mxu0 0.0
    %1468 = vmatprep.subr.mxu0 0.0
    %1469 = vmatpush2.msra.mxu0 0.0
    %1470 = vmatprep.subr.mxu0 0.0
    %1471 = vmatpush2.msra.mxu0 0.0
    %1472 = vmatprep.subr.mxu0 0.0
    %1473 = vmatpush2.msra.mxu0 0.0
    %1474 = vmatprep.subr.mxu0 0.0
    %1475 = vmatpush2.msra.mxu0 0.0
    %1476 = vmatprep.subr.mxu0 0.0
    %1477 = vmatpush2.msra.mxu0 0.0
    %1478 = vmatprep.subr.mxu0 0.0
    %1479 = vmatpush2.msra.mxu0 0.0
    %1480 = vmatprep.subr.mxu0 0.0
    %1481 = vmatpush2.msra.mxu0 0.0
    %1482 = vmatprep.subr.mxu0 0.0
    %1483 = vmatpush2.msra.mxu0 0.0
    %1484 = vmatprep.subr.mxu0 0.0
    %1485 = vmatpush2.msra.mxu0 0.0
    %1486 = vmatprep.subr.mxu0 0.0
    %1487 = vmatpush2.msra.mxu0 0.0
    %1488 = vmatprep.subr.mxu0 0.0
    %1489 = vmatpush2.msra.mxu0 0.0
    %1490 = vmatprep.mubr.f32.mxu0 0.0
    %1491 = vmatmul.mubr.f32.gmra.mxu0 %v1424
    %v1492 = vpop.f32.mrf.mxu0
    %v1493 = vadd.f32 0.0, %v1492
    %v1494 = vpop.f32.mrf.mxu0
    %1495 = vdwg.mxu0
    %v1496 = vadd.f32 %v1418, %v1493
    %v1497 = vxor.u32 %v1496, 2147483648
    %v1498 = vmul.f32 %v1497, 1.442695
    %v1499 = vpow.pop %v1498
    %v1500 = vadd.f32 %v1499, 1.0
    %v1501 = vrcp.pop %v1500
    %v1502 = vmul.f32 1.0, %v1501
    %v1503 = vtanh.pop %v1496
    %v1504 = vmul.f32 %v1502, %v1241
    %1506 = vrot.lane.b32.xlu0 %v1503, 64
    %v1507 = vpop.permute.xlu0 %1506
    %v1509 = vmul.f32 %v1502, %v1507
    %1511 = vrot.lane.b32.xlu0 %v1509, 32
    %v1512 = vpop.permute.xlu0 %1511
    %v1514 = vadd.f32 %v1504, %v1512
    %v1515 = vtanh.pop %v1514
    %1517 = vrot.lane.b32.xlu0 %v1515, 64
    %v1518 = vpop.permute.xlu0 %1517
    %v1520 = vmul.f32 %v1502, %v1518
    %1521 = vmatprep.subr.mxu0 0.0
    %1522 = vmatpush1.msra.mxu0 0.0
    %1523 = vmatprep.subr.mxu0 0.0
    %1524 = vmatpush1.msra.mxu0 0.0
    %1525 = vmatprep.subr.mxu0 0.0
    %1526 = vmatpush1.msra.mxu0 0.0
    %1527 = vmatprep.subr.mxu0 0.0
    %1528 = vmatpush1.msra.mxu0 0.0
    %1529 = vmatprep.subr.mxu0 0.0
    %1530 = vmatpush1.msra.mxu0 0.0
    %1531 = vmatprep.subr.mxu0 0.0
    %1532 = vmatpush1.msra.mxu0 0.0
    %1533 = vmatprep.subr.mxu0 0.0
    %1534 = vmatpush1.msra.mxu0 0.0
    %1535 = vmatprep.subr.mxu0 0.0
    %1536 = vmatpush1.msra.mxu0 0.0
    %1537 = vmatprep.subr.mxu0 0.0
    %1538 = vmatpush1.msra.mxu0 0.0
    %1539 = vmatprep.subr.mxu0 0.0
    %1540 = vmatpush1.msra.mxu0 0.0
    %1541 = vmatprep.subr.mxu0 0.0
    %1542 = vmatpush1.msra.mxu0 0.0
    %1543 = vmatprep.subr.mxu0 0.0
    %1544 = vmatpush1.msra.mxu0 0.0
    %1545 = vmatprep.subr.mxu0 0.0
    %1546 = vmatpush1.msra.mxu0 %v41
    %1547 = vmatprep.subr.mxu0 0.0
    %1548 = vmatpush1.msra.mxu0 %v40
    %1549 = vmatprep.subr.mxu0 0.0
    %1550 = vmatpush1.msra.mxu0 %v39
    %1551 = vmatprep.subr.mxu0 0.0
    %1552 = vmatpush1.msra.mxu0 %v38
    %1553 = vmatprep.subr.mxu0 0.0
    %1554 = vmatpush2.msra.mxu0 0.0
    %1555 = vmatprep.subr.mxu0 0.0
    %1556 = vmatpush2.msra.mxu0 0.0
    %1557 = vmatprep.subr.mxu0 0.0
    %1558 = vmatpush2.msra.mxu0 0.0
    %1559 = vmatprep.subr.mxu0 0.0
    %1560 = vmatpush2.msra.mxu0 0.0
    %1561 = vmatprep.subr.mxu0 0.0
    %1562 = vmatpush2.msra.mxu0 0.0
    %1563 = vmatprep.subr.mxu0 0.0
    %1564 = vmatpush2.msra.mxu0 0.0
    %1565 = vmatprep.subr.mxu0 0.0
    %1566 = vmatpush2.msra.mxu0 0.0
    %1567 = vmatprep.subr.mxu0 0.0
    %1568 = vmatpush2.msra.mxu0 0.0
    %1569 = vmatprep.subr.mxu0 0.0
    %1570 = vmatpush2.msra.mxu0 0.0
    %1571 = vmatprep.subr.mxu0 0.0
    %1572 = vmatpush2.msra.mxu0 0.0
    %1573 = vmatprep.subr.mxu0 0.0
    %1574 = vmatpush2.msra.mxu0 0.0
    %1575 = vmatprep.subr.mxu0 0.0
    %1576 = vmatpush2.msra.mxu0 0.0
    %1577 = vmatprep.subr.mxu0 0.0
    %1578 = vmatpush2.msra.mxu0 0.0
    %1579 = vmatprep.subr.mxu0 0.0
    %1580 = vmatpush2.msra.mxu0 0.0
    %1581 = vmatprep.subr.mxu0 0.0
    %1582 = vmatpush2.msra.mxu0 0.0
    %1583 = vmatprep.subr.mxu0 0.0
    %1584 = vmatpush2.msra.mxu0 0.0
    %1585 = vmatprep.mubr.f32.mxu0 0.0
    %1586 = vmatmul.mubr.f32.gmra.mxu0 %v1349
    %v1587 = vpop.f32.mrf.mxu0
    %v1588 = vadd.f32 0.0, %v1587
    %v1589 = vpop.f32.mrf.mxu0
    %1590 = vdwg.mxu0
    %v1592 = vrot.slane %v1588, 6
    %v1594 = vadd.f32 %v139, %v1592
    %v1595 = vxor.u32 %v1594, 2147483648
    %v1596 = vmul.f32 %v1595, 1.442695
    %v1597 = vpow.pop %v1596
    %v1598 = vadd.f32 %v1597, 1.0
    %v1599 = vrcp.pop %v1598
    %v1600 = vmul.f32 1.0, %v1599
    %v1601 = vtanh.pop %v1594
    %v1603 = vrot.slane %v1339, 6
    %v1605 = vmul.f32 %v1600, %v1603
    %1607 = vrot.lane.b32.xlu0 %v1601, 64
    %v1608 = vpop.permute.xlu0 %1607
    %v1610 = vmul.f32 %v1600, %v1608
    %1612 = vrot.lane.b32.xlu0 %v1610, 32
    %v1613 = vpop.permute.xlu0 %1612
    %v1615 = vadd.f32 %v1605, %v1613
    %v1616 = vtanh.pop %v1615
    %1618 = vrot.lane.b32.xlu0 %v1616, 64
    %v1619 = vpop.permute.xlu0 %1618
    %v1621 = vmul.f32 %v1600, %v1619
    %v1623 = vrot.slane %v1621, 2
    %1624 = vrot.lane.b32.xlu0 %v1623, 32
    %v1625 = vpop.permute.xlu0 %1624
    %v1626 = vsel %vm142, %v1625, 0
    %1628 = vmatprep.subr.mxu0 0.0
    %1629 = vmatpush1.msra.mxu0 0.0
    %1630 = vmatprep.subr.mxu0 0.0
    %1631 = vmatpush1.msra.mxu0 0.0
    %1632 = vmatprep.subr.mxu0 0.0
    %1633 = vmatpush1.msra.mxu0 0.0
    %1634 = vmatprep.subr.mxu0 0.0
    %1635 = vmatpush1.msra.mxu0 0.0
    %1636 = vmatprep.subr.mxu0 0.0
    %1637 = vmatpush1.msra.mxu0 0.0
    %1638 = vmatprep.subr.mxu0 0.0
    %1639 = vmatpush1.msra.mxu0 0.0
    %1640 = vmatprep.subr.mxu0 0.0
    %1641 = vmatpush1.msra.mxu0 0.0
    %1642 = vmatprep.subr.mxu0 0.0
    %1643 = vmatpush1.msra.mxu0 0.0
    %1644 = vmatprep.subr.mxu0 0.0
    %1645 = vmatpush1.msra.mxu0 0.0
    %1646 = vmatprep.subr.mxu0 0.0
    %1647 = vmatpush1.msra.mxu0 0.0
    %1648 = vmatprep.subr.mxu0 0.0
    %1649 = vmatpush1.msra.mxu0 0.0
    %1650 = vmatprep.subr.mxu0 0.0
    %1651 = vmatpush1.msra.mxu0 0.0
    %1652 = vmatprep.subr.mxu0 0.0
    %1653 = vmatpush1.msra.mxu0 %v37
    %1654 = vmatprep.subr.mxu0 0.0
    %1655 = vmatpush1.msra.mxu0 %v36
    %1656 = vmatprep.subr.mxu0 0.0
    %1657 = vmatpush1.msra.mxu0 %v35
    %1658 = vmatprep.subr.mxu0 0.0
    %1659 = vmatpush1.msra.mxu0 %v34
    %1660 = vmatprep.subr.mxu0 0.0
    %1661 = vmatpush2.msra.mxu0 0.0
    %1662 = vmatprep.subr.mxu0 0.0
    %1663 = vmatpush2.msra.mxu0 0.0
    %1664 = vmatprep.subr.mxu0 0.0
    %1665 = vmatpush2.msra.mxu0 0.0
    %1666 = vmatprep.subr.mxu0 0.0
    %1667 = vmatpush2.msra.mxu0 0.0
    %1668 = vmatprep.subr.mxu0 0.0
    %1669 = vmatpush2.msra.mxu0 0.0
    %1670 = vmatprep.subr.mxu0 0.0
    %1671 = vmatpush2.msra.mxu0 0.0
    %1672 = vmatprep.subr.mxu0 0.0
    %1673 = vmatpush2.msra.mxu0 0.0
    %1674 = vmatprep.subr.mxu0 0.0
    %1675 = vmatpush2.msra.mxu0 0.0
    %1676 = vmatprep.subr.mxu0 0.0
    %1677 = vmatpush2.msra.mxu0 0.0
    %1678 = vmatprep.subr.mxu0 0.0
    %1679 = vmatpush2.msra.mxu0 0.0
    %1680 = vmatprep.subr.mxu0 0.0
    %1681 = vmatpush2.msra.mxu0 0.0
    %1682 = vmatprep.subr.mxu0 0.0
    %1683 = vmatpush2.msra.mxu0 0.0
    %1684 = vmatprep.subr.mxu0 0.0
    %1685 = vmatpush2.msra.mxu0 0.0
    %1686 = vmatprep.subr.mxu0 0.0
    %1687 = vmatpush2.msra.mxu0 0.0
    %1688 = vmatprep.subr.mxu0 0.0
    %1689 = vmatpush2.msra.mxu0 0.0
    %1690 = vmatprep.subr.mxu0 0.0
    %1691 = vmatpush2.msra.mxu0 0.0
    %1692 = vmatprep.mubr.f32.mxu0 0.0
    %1693 = vmatmul.mubr.f32.gmra.mxu0 %v1626
    %v1694 = vpop.f32.mrf.mxu0
    %v1695 = vadd.f32 %v245, %v1694
    %v1696 = vpop.f32.mrf.mxu0
    %1697 = vdwg.mxu0
    %1699 = vrot.lane.b32.xlu0 %v1520, 32
    %v1700 = vpop.permute.xlu0 %1699
    %v1701 = vsel %vm142, %v1700, 0
    %1703 = vmatprep.subr.mxu0 0.0
    %1704 = vmatpush1.msra.mxu0 0.0
    %1705 = vmatprep.subr.mxu0 0.0
    %1706 = vmatpush1.msra.mxu0 0.0
    %1707 = vmatprep.subr.mxu0 0.0
    %1708 = vmatpush1.msra.mxu0 0.0
    %1709 = vmatprep.subr.mxu0 0.0
    %1710 = vmatpush1.msra.mxu0 0.0
    %1711 = vmatprep.subr.mxu0 0.0
    %1712 = vmatpush1.msra.mxu0 0.0
    %1713 = vmatprep.subr.mxu0 0.0
    %1714 = vmatpush1.msra.mxu0 0.0
    %1715 = vmatprep.subr.mxu0 0.0
    %1716 = vmatpush1.msra.mxu0 0.0
    %1717 = vmatprep.subr.mxu0 0.0
    %1718 = vmatpush1.msra.mxu0 0.0
    %1719 = vmatprep.subr.mxu0 0.0
    %1720 = vmatpush1.msra.mxu0 0.0
    %1721 = vmatprep.subr.mxu0 0.0
    %1722 = vmatpush1.msra.mxu0 0.0
    %1723 = vmatprep.subr.mxu0 0.0
    %1724 = vmatpush1.msra.mxu0 0.0
    %1725 = vmatprep.subr.mxu0 0.0
    %1726 = vmatpush1.msra.mxu0 0.0
    %1727 = vmatprep.subr.mxu0 0.0
    %1728 = vmatpush1.msra.mxu0 %v45
    %1729 = vmatprep.subr.mxu0 0.0
    %1730 = vmatpush1.msra.mxu0 %v44
    %1731 = vmatprep.subr.mxu0 0.0
    %1732 = vmatpush1.msra.mxu0 %v43
    %1733 = vmatprep.subr.mxu0 0.0
    %1734 = vmatpush1.msra.mxu0 %v42
    %1735 = vmatprep.subr.mxu0 0.0
    %1736 = vmatpush2.msra.mxu0 0.0
    %1737 = vmatprep.subr.mxu0 0.0
    %1738 = vmatpush2.msra.mxu0 0.0
    %1739 = vmatprep.subr.mxu0 0.0
    %1740 = vmatpush2.msra.mxu0 0.0
    %1741 = vmatprep.subr.mxu0 0.0
    %1742 = vmatpush2.msra.mxu0 0.0
    %1743 = vmatprep.subr.mxu0 0.0
    %1744 = vmatpush2.msra.mxu0 0.0
    %1745 = vmatprep.subr.mxu0 0.0
    %1746 = vmatpush2.msra.mxu0 0.0
    %1747 = vmatprep.subr.mxu0 0.0
    %1748 = vmatpush2.msra.mxu0 0.0
    %1749 = vmatprep.subr.mxu0 0.0
    %1750 = vmatpush2.msra.mxu0 0.0
    %1751 = vmatprep.subr.mxu0 0.0
    %1752 = vmatpush2.msra.mxu0 0.0
    %1753 = vmatprep.subr.mxu0 0.0
    %1754 = vmatpush2.msra.mxu0 0.0
    %1755 = vmatprep.subr.mxu0 0.0
    %1756 = vmatpush2.msra.mxu0 0.0
    %1757 = vmatprep.subr.mxu0 0.0
    %1758 = vmatpush2.msra.mxu0 0.0
    %1759 = vmatprep.subr.mxu0 0.0
    %1760 = vmatpush2.msra.mxu0 0.0
    %1761 = vmatprep.subr.mxu0 0.0
    %1762 = vmatpush2.msra.mxu0 0.0
    %1763 = vmatprep.subr.mxu0 0.0
    %1764 = vmatpush2.msra.mxu0 0.0
    %1765 = vmatprep.subr.mxu0 0.0
    %1766 = vmatpush2.msra.mxu0 0.0
    %1767 = vmatprep.mubr.f32.mxu0 0.0
    %1768 = vmatmul.mubr.f32.gmra.mxu0 %v1701
    %v1769 = vpop.f32.mrf.mxu0
    %v1770 = vadd.f32 0.0, %v1769
    %v1771 = vpop.f32.mrf.mxu0
    %1772 = vdwg.mxu0
    %v1773 = vadd.f32 %v1695, %v1770
    %v1774 = vxor.u32 %v1773, 2147483648
    %v1775 = vmul.f32 %v1774, 1.442695
    %v1776 = vpow.pop %v1775
    %v1777 = vadd.f32 %v1776, 1.0
    %v1778 = vrcp.pop %v1777
    %v1779 = vmul.f32 1.0, %v1778
    %v1780 = vtanh.pop %v1773
    %v1781 = vmul.f32 %v1779, %v1514
    %1783 = vrot.lane.b32.xlu0 %v1780, 64
    %v1784 = vpop.permute.xlu0 %1783
    %v1786 = vmul.f32 %v1779, %v1784
    %1788 = vrot.lane.b32.xlu0 %v1786, 32
    %v1789 = vpop.permute.xlu0 %1788
    %v1791 = vadd.f32 %v1781, %v1789
    %v1792 = vtanh.pop %v1791
    %1794 = vrot.lane.b32.xlu0 %v1792, 64
    %v1795 = vpop.permute.xlu0 %1794
    %v1797 = vmul.f32 %v1779, %v1795
    %1798 = vmatprep.subr.mxu0 0.0
    %1799 = vmatpush1.msra.mxu0 0.0
    %1800 = vmatprep.subr.mxu0 0.0
    %1801 = vmatpush1.msra.mxu0 0.0
    %1802 = vmatprep.subr.mxu0 0.0
    %1803 = vmatpush1.msra.mxu0 0.0
    %1804 = vmatprep.subr.mxu0 0.0
    %1805 = vmatpush1.msra.mxu0 0.0
    %1806 = vmatprep.subr.mxu0 0.0
    %1807 = vmatpush1.msra.mxu0 0.0
    %1808 = vmatprep.subr.mxu0 0.0
    %1809 = vmatpush1.msra.mxu0 0.0
    %1810 = vmatprep.subr.mxu0 0.0
    %1811 = vmatpush1.msra.mxu0 0.0
    %1812 = vmatprep.subr.mxu0 0.0
    %1813 = vmatpush1.msra.mxu0 0.0
    %1814 = vmatprep.subr.mxu0 0.0
    %1815 = vmatpush1.msra.mxu0 0.0
    %1816 = vmatprep.subr.mxu0 0.0
    %1817 = vmatpush1.msra.mxu0 0.0
    %1818 = vmatprep.subr.mxu0 0.0
    %1819 = vmatpush1.msra.mxu0 0.0
    %1820 = vmatprep.subr.mxu0 0.0
    %1821 = vmatpush1.msra.mxu0 0.0
    %1822 = vmatprep.subr.mxu0 0.0
    %1823 = vmatpush1.msra.mxu0 %v41
    %1824 = vmatprep.subr.mxu0 0.0
    %1825 = vmatpush1.msra.mxu0 %v40
    %1826 = vmatprep.subr.mxu0 0.0
    %1827 = vmatpush1.msra.mxu0 %v39
    %1828 = vmatprep.subr.mxu0 0.0
    %1829 = vmatpush1.msra.mxu0 %v38
    %1830 = vmatprep.subr.mxu0 0.0
    %1831 = vmatpush2.msra.mxu0 0.0
    %1832 = vmatprep.subr.mxu0 0.0
    %1833 = vmatpush2.msra.mxu0 0.0
    %1834 = vmatprep.subr.mxu0 0.0
    %1835 = vmatpush2.msra.mxu0 0.0
    %1836 = vmatprep.subr.mxu0 0.0
    %1837 = vmatpush2.msra.mxu0 0.0
    %1838 = vmatprep.subr.mxu0 0.0
    %1839 = vmatpush2.msra.mxu0 0.0
    %1840 = vmatprep.subr.mxu0 0.0
    %1841 = vmatpush2.msra.mxu0 0.0
    %1842 = vmatprep.subr.mxu0 0.0
    %1843 = vmatpush2.msra.mxu0 0.0
    %1844 = vmatprep.subr.mxu0 0.0
    %1845 = vmatpush2.msra.mxu0 0.0
    %1846 = vmatprep.subr.mxu0 0.0
    %1847 = vmatpush2.msra.mxu0 0.0
    %1848 = vmatprep.subr.mxu0 0.0
    %1849 = vmatpush2.msra.mxu0 0.0
    %1850 = vmatprep.subr.mxu0 0.0
    %1851 = vmatpush2.msra.mxu0 0.0
    %1852 = vmatprep.subr.mxu0 0.0
    %1853 = vmatpush2.msra.mxu0 0.0
    %1854 = vmatprep.subr.mxu0 0.0
    %1855 = vmatpush2.msra.mxu0 0.0
    %1856 = vmatprep.subr.mxu0 0.0
    %1857 = vmatpush2.msra.mxu0 0.0
    %1858 = vmatprep.subr.mxu0 0.0
    %1859 = vmatpush2.msra.mxu0 0.0
    %1860 = vmatprep.subr.mxu0 0.0
    %1861 = vmatpush2.msra.mxu0 0.0
    %1862 = vmatprep.mubr.f32.mxu0 0.0
    %1863 = vmatmul.mubr.f32.gmra.mxu0 %v1626
    %v1864 = vpop.f32.mrf.mxu0
    %v1865 = vadd.f32 0.0, %v1864
    %v1866 = vpop.f32.mrf.mxu0
    %1867 = vdwg.mxu0
    %v1869 = vrot.slane %v1865, 4
    %v1871 = vadd.f32 %v139, %v1869
    %v1872 = vxor.u32 %v1871, 2147483648
    %v1873 = vmul.f32 %v1872, 1.442695
    %v1874 = vpow.pop %v1873
    %v1875 = vadd.f32 %v1874, 1.0
    %v1876 = vrcp.pop %v1875
    %v1877 = vmul.f32 1.0, %v1876
    %v1878 = vtanh.pop %v1871
    %v1880 = vrot.slane %v1615, 6
    %v1882 = vmul.f32 %v1877, %v1880
    %1884 = vrot.lane.b32.xlu0 %v1878, 64
    %v1885 = vpop.permute.xlu0 %1884
    %v1887 = vmul.f32 %v1877, %v1885
    %1889 = vrot.lane.b32.xlu0 %v1887, 32
    %v1890 = vpop.permute.xlu0 %1889
    %v1892 = vadd.f32 %v1882, %v1890
    %v1893 = vtanh.pop %v1892
    %1895 = vrot.lane.b32.xlu0 %v1893, 64
    %v1896 = vpop.permute.xlu0 %1895
    %v1898 = vmul.f32 %v1877, %v1896
    %v1900 = vrot.slane %v1898, 4
    %1901 = vrot.lane.b32.xlu0 %v1900, 32
    %v1902 = vpop.permute.xlu0 %1901
    %v1903 = vsel %vm142, %v1902, 0
    %1905 = vmatprep.subr.mxu0 0.0
    %1906 = vmatpush1.msra.mxu0 0.0
    %1907 = vmatprep.subr.mxu0 0.0
    %1908 = vmatpush1.msra.mxu0 0.0
    %1909 = vmatprep.subr.mxu0 0.0
    %1910 = vmatpush1.msra.mxu0 0.0
    %1911 = vmatprep.subr.mxu0 0.0
    %1912 = vmatpush1.msra.mxu0 0.0
    %1913 = vmatprep.subr.mxu0 0.0
    %1914 = vmatpush1.msra.mxu0 0.0
    %1915 = vmatprep.subr.mxu0 0.0
    %1916 = vmatpush1.msra.mxu0 0.0
    %1917 = vmatprep.subr.mxu0 0.0
    %1918 = vmatpush1.msra.mxu0 0.0
    %1919 = vmatprep.subr.mxu0 0.0
    %1920 = vmatpush1.msra.mxu0 0.0
    %1921 = vmatprep.subr.mxu0 0.0
    %1922 = vmatpush1.msra.mxu0 0.0
    %1923 = vmatprep.subr.mxu0 0.0
    %1924 = vmatpush1.msra.mxu0 0.0
    %1925 = vmatprep.subr.mxu0 0.0
    %1926 = vmatpush1.msra.mxu0 0.0
    %1927 = vmatprep.subr.mxu0 0.0
    %1928 = vmatpush1.msra.mxu0 0.0
    %1929 = vmatprep.subr.mxu0 0.0
    %1930 = vmatpush1.msra.mxu0 %v37
    %1931 = vmatprep.subr.mxu0 0.0
    %1932 = vmatpush1.msra.mxu0 %v36
    %1933 = vmatprep.subr.mxu0 0.0
    %1934 = vmatpush1.msra.mxu0 %v35
    %1935 = vmatprep.subr.mxu0 0.0
    %1936 = vmatpush1.msra.mxu0 %v34
    %1937 = vmatprep.subr.mxu0 0.0
    %1938 = vmatpush2.msra.mxu0 0.0
    %1939 = vmatprep.subr.mxu0 0.0
    %1940 = vmatpush2.msra.mxu0 0.0
    %1941 = vmatprep.subr.mxu0 0.0
    %1942 = vmatpush2.msra.mxu0 0.0
    %1943 = vmatprep.subr.mxu0 0.0
    %1944 = vmatpush2.msra.mxu0 0.0
    %1945 = vmatprep.subr.mxu0 0.0
    %1946 = vmatpush2.msra.mxu0 0.0
    %1947 = vmatprep.subr.mxu0 0.0
    %1948 = vmatpush2.msra.mxu0 0.0
    %1949 = vmatprep.subr.mxu0 0.0
    %1950 = vmatpush2.msra.mxu0 0.0
    %1951 = vmatprep.subr.mxu0 0.0
    %1952 = vmatpush2.msra.mxu0 0.0
    %1953 = vmatprep.subr.mxu0 0.0
    %1954 = vmatpush2.msra.mxu0 0.0
    %1955 = vmatprep.subr.mxu0 0.0
    %1956 = vmatpush2.msra.mxu0 0.0
    %1957 = vmatprep.subr.mxu0 0.0
    %1958 = vmatpush2.msra.mxu0 0.0
    %1959 = vmatprep.subr.mxu0 0.0
    %1960 = vmatpush2.msra.mxu0 0.0
    %1961 = vmatprep.subr.mxu0 0.0
    %1962 = vmatpush2.msra.mxu0 0.0
    %1963 = vmatprep.subr.mxu0 0.0
    %1964 = vmatpush2.msra.mxu0 0.0
    %1965 = vmatprep.subr.mxu0 0.0
    %1966 = vmatpush2.msra.mxu0 0.0
    %1967 = vmatprep.subr.mxu0 0.0
    %1968 = vmatpush2.msra.mxu0 0.0
    %1969 = vmatprep.mubr.f32.mxu0 0.0
    %1970 = vmatmul.mubr.f32.gmra.mxu0 %v1903
    %v1971 = vpop.f32.mrf.mxu0
    %v1972 = vadd.f32 %v245, %v1971
    %v1973 = vpop.f32.mrf.mxu0
    %1974 = vdwg.mxu0
    %1976 = vrot.lane.b32.xlu0 %v1797, 32
    %v1977 = vpop.permute.xlu0 %1976
    %v1978 = vsel %vm142, %v1977, 0
    %1980 = vmatprep.subr.mxu0 0.0
    %1981 = vmatpush1.msra.mxu0 0.0
    %1982 = vmatprep.subr.mxu0 0.0
    %1983 = vmatpush1.msra.mxu0 0.0
    %1984 = vmatprep.subr.mxu0 0.0
    %1985 = vmatpush1.msra.mxu0 0.0
    %1986 = vmatprep.subr.mxu0 0.0
    %1987 = vmatpush1.msra.mxu0 0.0
    %1988 = vmatprep.subr.mxu0 0.0
    %1989 = vmatpush1.msra.mxu0 0.0
    %1990 = vmatprep.subr.mxu0 0.0
    %1991 = vmatpush1.msra.mxu0 0.0
    %1992 = vmatprep.subr.mxu0 0.0
    %1993 = vmatpush1.msra.mxu0 0.0
    %1994 = vmatprep.subr.mxu0 0.0
    %1995 = vmatpush1.msra.mxu0 0.0
    %1996 = vmatprep.subr.mxu0 0.0
    %1997 = vmatpush1.msra.mxu0 0.0
    %1998 = vmatprep.subr.mxu0 0.0
    %1999 = vmatpush1.msra.mxu0 0.0
    %2000 = vmatprep.subr.mxu0 0.0
    %2001 = vmatpush1.msra.mxu0 0.0
    %2002 = vmatprep.subr.mxu0 0.0
    %2003 = vmatpush1.msra.mxu0 0.0
    %2004 = vmatprep.subr.mxu0 0.0
    %2005 = vmatpush1.msra.mxu0 %v45
    %2006 = vmatprep.subr.mxu0 0.0
    %2007 = vmatpush1.msra.mxu0 %v44
    %2008 = vmatprep.subr.mxu0 0.0
    %2009 = vmatpush1.msra.mxu0 %v43
    %2010 = vmatprep.subr.mxu0 0.0
    %2011 = vmatpush1.msra.mxu0 %v42
    %2012 = vmatprep.subr.mxu0 0.0
    %2013 = vmatpush2.msra.mxu0 0.0
    %2014 = vmatprep.subr.mxu0 0.0
    %2015 = vmatpush2.msra.mxu0 0.0
    %2016 = vmatprep.subr.mxu0 0.0
    %2017 = vmatpush2.msra.mxu0 0.0
    %2018 = vmatprep.subr.mxu0 0.0
    %2019 = vmatpush2.msra.mxu0 0.0
    %2020 = vmatprep.subr.mxu0 0.0
    %2021 = vmatpush2.msra.mxu0 0.0
    %2022 = vmatprep.subr.mxu0 0.0
    %2023 = vmatpush2.msra.mxu0 0.0
    %2024 = vmatprep.subr.mxu0 0.0
    %2025 = vmatpush2.msra.mxu0 0.0
    %2026 = vmatprep.subr.mxu0 0.0
    %2027 = vmatpush2.msra.mxu0 0.0
    %2028 = vmatprep.subr.mxu0 0.0
    %2029 = vmatpush2.msra.mxu0 0.0
    %2030 = vmatprep.subr.mxu0 0.0
    %2031 = vmatpush2.msra.mxu0 0.0
    %2032 = vmatprep.subr.mxu0 0.0
    %2033 = vmatpush2.msra.mxu0 0.0
    %2034 = vmatprep.subr.mxu0 0.0
    %2035 = vmatpush2.msra.mxu0 0.0
    %2036 = vmatprep.subr.mxu0 0.0
    %2037 = vmatpush2.msra.mxu0 0.0
    %2038 = vmatprep.subr.mxu0 0.0
    %2039 = vmatpush2.msra.mxu0 0.0
    %2040 = vmatprep.subr.mxu0 0.0
    %2041 = vmatpush2.msra.mxu0 0.0
    %2042 = vmatprep.subr.mxu0 0.0
    %2043 = vmatpush2.msra.mxu0 0.0
    %2044 = vmatprep.mubr.f32.mxu0 0.0
    %2045 = vmatmul.mubr.f32.gmra.mxu0 %v1978
    %v2046 = vpop.f32.mrf.mxu0
    %v2047 = vadd.f32 0.0, %v2046
    %v2048 = vpop.f32.mrf.mxu0
    %2049 = vdwg.mxu0
    %v2050 = vadd.f32 %v1972, %v2047
    %v2051 = vxor.u32 %v2050, 2147483648
    %v2052 = vmul.f32 %v2051, 1.442695
    %v2053 = vpow.pop %v2052
    %v2054 = vadd.f32 %v2053, 1.0
    %v2055 = vrcp.pop %v2054
    %v2056 = vmul.f32 1.0, %v2055
    %v2057 = vtanh.pop %v2050
    %v2058 = vmul.f32 %v2056, %v1791
    %2060 = vrot.lane.b32.xlu0 %v2057, 64
    %v2061 = vpop.permute.xlu0 %2060
    %v2063 = vmul.f32 %v2056, %v2061
    %2065 = vrot.lane.b32.xlu0 %v2063, 32
    %v2066 = vpop.permute.xlu0 %2065
    %v2068 = vadd.f32 %v2058, %v2066
    %v2069 = vtanh.pop %v2068
    %2071 = vrot.lane.b32.xlu0 %v2069, 64
    %v2072 = vpop.permute.xlu0 %2071
    %v2074 = vmul.f32 %v2056, %v2072
    %2075 = vmatprep.subr.mxu0 0.0
    %2076 = vmatpush1.msra.mxu0 0.0
    %2077 = vmatprep.subr.mxu0 0.0
    %2078 = vmatpush1.msra.mxu0 0.0
    %2079 = vmatprep.subr.mxu0 0.0
    %2080 = vmatpush1.msra.mxu0 0.0
    %2081 = vmatprep.subr.mxu0 0.0
    %2082 = vmatpush1.msra.mxu0 0.0
    %2083 = vmatprep.subr.mxu0 0.0
    %2084 = vmatpush1.msra.mxu0 0.0
    %2085 = vmatprep.subr.mxu0 0.0
    %2086 = vmatpush1.msra.mxu0 0.0
    %2087 = vmatprep.subr.mxu0 0.0
    %2088 = vmatpush1.msra.mxu0 0.0
    %2089 = vmatprep.subr.mxu0 0.0
    %2090 = vmatpush1.msra.mxu0 0.0
    %2091 = vmatprep.subr.mxu0 0.0
    %2092 = vmatpush1.msra.mxu0 0.0
    %2093 = vmatprep.subr.mxu0 0.0
    %2094 = vmatpush1.msra.mxu0 0.0
    %2095 = vmatprep.subr.mxu0 0.0
    %2096 = vmatpush1.msra.mxu0 0.0
    %2097 = vmatprep.subr.mxu0 0.0
    %2098 = vmatpush1.msra.mxu0 0.0
    %2099 = vmatprep.subr.mxu0 0.0
    %2100 = vmatpush1.msra.mxu0 %v41
    %2101 = vmatprep.subr.mxu0 0.0
    %2102 = vmatpush1.msra.mxu0 %v40
    %2103 = vmatprep.subr.mxu0 0.0
    %2104 = vmatpush1.msra.mxu0 %v39
    %2105 = vmatprep.subr.mxu0 0.0
    %2106 = vmatpush1.msra.mxu0 %v38
    %2107 = vmatprep.subr.mxu0 0.0
    %2108 = vmatpush2.msra.mxu0 0.0
    %2109 = vmatprep.subr.mxu0 0.0
    %2110 = vmatpush2.msra.mxu0 0.0
    %2111 = vmatprep.subr.mxu0 0.0
    %2112 = vmatpush2.msra.mxu0 0.0
    %2113 = vmatprep.subr.mxu0 0.0
    %2114 = vmatpush2.msra.mxu0 0.0
    %2115 = vmatprep.subr.mxu0 0.0
    %2116 = vmatpush2.msra.mxu0 0.0
    %2117 = vmatprep.subr.mxu0 0.0
    %2118 = vmatpush2.msra.mxu0 0.0
    %2119 = vmatprep.subr.mxu0 0.0
    %2120 = vmatpush2.msra.mxu0 0.0
    %2121 = vmatprep.subr.mxu0 0.0
    %2122 = vmatpush2.msra.mxu0 0.0
    %2123 = vmatprep.subr.mxu0 0.0
    %2124 = vmatpush2.msra.mxu0 0.0
    %2125 = vmatprep.subr.mxu0 0.0
    %2126 = vmatpush2.msra.mxu0 0.0
    %2127 = vmatprep.subr.mxu0 0.0
    %2128 = vmatpush2.msra.mxu0 0.0
    %2129 = vmatprep.subr.mxu0 0.0
    %2130 = vmatpush2.msra.mxu0 0.0
    %2131 = vmatprep.subr.mxu0 0.0
    %2132 = vmatpush2.msra.mxu0 0.0
    %2133 = vmatprep.subr.mxu0 0.0
    %2134 = vmatpush2.msra.mxu0 0.0
    %2135 = vmatprep.subr.mxu0 0.0
    %2136 = vmatpush2.msra.mxu0 0.0
    %2137 = vmatprep.subr.mxu0 0.0
    %2138 = vmatpush2.msra.mxu0 0.0
    %2139 = vmatprep.mubr.f32.mxu0 0.0
    %2140 = vmatmul.mubr.f32.gmra.mxu0 %v1903
    %v2141 = vpop.f32.mrf.mxu0
    %v2142 = vadd.f32 0.0, %v2141
    %v2143 = vpop.f32.mrf.mxu0
    %2144 = vdwg.mxu0
    %v2146 = vrot.slane %v2142, 2
    %v2148 = vadd.f32 %v139, %v2146
    %v2149 = vxor.u32 %v2148, 2147483648
    %v2150 = vmul.f32 %v2149, 1.442695
    %v2151 = vpow.pop %v2150
    %v2152 = vadd.f32 %v2151, 1.0
    %v2153 = vrcp.pop %v2152
    %v2154 = vmul.f32 1.0, %v2153
    %v2155 = vtanh.pop %v2148
    %v2157 = vrot.slane %v1892, 6
    %v2159 = vmul.f32 %v2154, %v2157
    %2161 = vrot.lane.b32.xlu0 %v2155, 64
    %v2162 = vpop.permute.xlu0 %2161
    %v2164 = vmul.f32 %v2154, %v2162
    %2166 = vrot.lane.b32.xlu0 %v2164, 32
    %v2167 = vpop.permute.xlu0 %2166
    %v2169 = vadd.f32 %v2159, %v2167
    %v2170 = vtanh.pop %v2169
    %2172 = vrot.lane.b32.xlu0 %v2170, 64
    %v2173 = vpop.permute.xlu0 %2172
    %v2175 = vmul.f32 %v2154, %v2173
    %v2177 = vrot.slane %v2175, 6
    %2178 = vrot.lane.b32.xlu0 %v2177, 32
    %v2179 = vpop.permute.xlu0 %2178
    %v2180 = vsel %vm142, %v2179, 0
    %2182 = vmatprep.subr.mxu0 0.0
    %2183 = vmatpush1.msra.mxu0 0.0
    %2184 = vmatprep.subr.mxu0 0.0
    %2185 = vmatpush1.msra.mxu0 0.0
    %2186 = vmatprep.subr.mxu0 0.0
    %2187 = vmatpush1.msra.mxu0 0.0
    %2188 = vmatprep.subr.mxu0 0.0
    %2189 = vmatpush1.msra.mxu0 0.0
    %2190 = vmatprep.subr.mxu0 0.0
    %2191 = vmatpush1.msra.mxu0 0.0
    %2192 = vmatprep.subr.mxu0 0.0
    %2193 = vmatpush1.msra.mxu0 0.0
    %2194 = vmatprep.subr.mxu0 0.0
    %2195 = vmatpush1.msra.mxu0 0.0
    %2196 = vmatprep.subr.mxu0 0.0
    %2197 = vmatpush1.msra.mxu0 0.0
    %2198 = vmatprep.subr.mxu0 0.0
    %2199 = vmatpush1.msra.mxu0 0.0
    %2200 = vmatprep.subr.mxu0 0.0
    %2201 = vmatpush1.msra.mxu0 0.0
    %2202 = vmatprep.subr.mxu0 0.0
    %2203 = vmatpush1.msra.mxu0 0.0
    %2204 = vmatprep.subr.mxu0 0.0
    %2205 = vmatpush1.msra.mxu0 0.0
    %2206 = vmatprep.subr.mxu0 0.0
    %2207 = vmatpush1.msra.mxu0 %v37
    %2208 = vmatprep.subr.mxu0 0.0
    %2209 = vmatpush1.msra.mxu0 %v36
    %2210 = vmatprep.subr.mxu0 0.0
    %2211 = vmatpush1.msra.mxu0 %v35
    %2212 = vmatprep.subr.mxu0 0.0
    %2213 = vmatpush1.msra.mxu0 %v34
    %2214 = vmatprep.subr.mxu0 0.0
    %2215 = vmatpush2.msra.mxu0 0.0
    %2216 = vmatprep.subr.mxu0 0.0
    %2217 = vmatpush2.msra.mxu0 0.0
    %2218 = vmatprep.subr.mxu0 0.0
    %2219 = vmatpush2.msra.mxu0 0.0
    %2220 = vmatprep.subr.mxu0 0.0
    %2221 = vmatpush2.msra.mxu0 0.0
    %2222 = vmatprep.subr.mxu0 0.0
    %2223 = vmatpush2.msra.mxu0 0.0
    %2224 = vmatprep.subr.mxu0 0.0
    %2225 = vmatpush2.msra.mxu0 0.0
    %2226 = vmatprep.subr.mxu0 0.0
    %2227 = vmatpush2.msra.mxu0 0.0
    %2228 = vmatprep.subr.mxu0 0.0
    %2229 = vmatpush2.msra.mxu0 0.0
    %2230 = vmatprep.subr.mxu0 0.0
    %2231 = vmatpush2.msra.mxu0 0.0
    %2232 = vmatprep.subr.mxu0 0.0
    %2233 = vmatpush2.msra.mxu0 0.0
    %2234 = vmatprep.subr.mxu0 0.0
    %2235 = vmatpush2.msra.mxu0 0.0
    %2236 = vmatprep.subr.mxu0 0.0
    %2237 = vmatpush2.msra.mxu0 0.0
    %2238 = vmatprep.subr.mxu0 0.0
    %2239 = vmatpush2.msra.mxu0 0.0
    %2240 = vmatprep.subr.mxu0 0.0
    %2241 = vmatpush2.msra.mxu0 0.0
    %2242 = vmatprep.subr.mxu0 0.0
    %2243 = vmatpush2.msra.mxu0 0.0
    %2244 = vmatprep.subr.mxu0 0.0
    %2245 = vmatpush2.msra.mxu0 0.0
    %2246 = vmatprep.mubr.f32.mxu0 0.0
    %2247 = vmatmul.mubr.f32.gmra.mxu0 %v2180
    %v2248 = vpop.f32.mrf.mxu0
    %v2249 = vadd.f32 %v245, %v2248
    %v2250 = vpop.f32.mrf.mxu0
    %2251 = vdwg.mxu0
    %2253 = vrot.lane.b32.xlu0 %v2074, 32
    %v2254 = vpop.permute.xlu0 %2253
    %v2255 = vsel %vm142, %v2254, 0
    %2257 = vmatprep.subr.mxu0 0.0
    %2258 = vmatpush1.msra.mxu0 0.0
    %2259 = vmatprep.subr.mxu0 0.0
    %2260 = vmatpush1.msra.mxu0 0.0
    %2261 = vmatprep.subr.mxu0 0.0
    %2262 = vmatpush1.msra.mxu0 0.0
    %2263 = vmatprep.subr.mxu0 0.0
    %2264 = vmatpush1.msra.mxu0 0.0
    %2265 = vmatprep.subr.mxu0 0.0
    %2266 = vmatpush1.msra.mxu0 0.0
    %2267 = vmatprep.subr.mxu0 0.0
    %2268 = vmatpush1.msra.mxu0 0.0
    %2269 = vmatprep.subr.mxu0 0.0
    %2270 = vmatpush1.msra.mxu0 0.0
    %2271 = vmatprep.subr.mxu0 0.0
    %2272 = vmatpush1.msra.mxu0 0.0
    %2273 = vmatprep.subr.mxu0 0.0
    %2274 = vmatpush1.msra.mxu0 0.0
    %2275 = vmatprep.subr.mxu0 0.0
    %2276 = vmatpush1.msra.mxu0 0.0
    %2277 = vmatprep.subr.mxu0 0.0
    %2278 = vmatpush1.msra.mxu0 0.0
    %2279 = vmatprep.subr.mxu0 0.0
    %2280 = vmatpush1.msra.mxu0 0.0
    %2281 = vmatprep.subr.mxu0 0.0
    %2282 = vmatpush1.msra.mxu0 %v45
    %2283 = vmatprep.subr.mxu0 0.0
    %2284 = vmatpush1.msra.mxu0 %v44
    %2285 = vmatprep.subr.mxu0 0.0
    %2286 = vmatpush1.msra.mxu0 %v43
    %2287 = vmatprep.subr.mxu0 0.0
    %2288 = vmatpush1.msra.mxu0 %v42
    %2289 = vmatprep.subr.mxu0 0.0
    %2290 = vmatpush2.msra.mxu0 0.0
    %2291 = vmatprep.subr.mxu0 0.0
    %2292 = vmatpush2.msra.mxu0 0.0
    %2293 = vmatprep.subr.mxu0 0.0
    %2294 = vmatpush2.msra.mxu0 0.0
    %2295 = vmatprep.subr.mxu0 0.0
    %2296 = vmatpush2.msra.mxu0 0.0
    %2297 = vmatprep.subr.mxu0 0.0
    %2298 = vmatpush2.msra.mxu0 0.0
    %2299 = vmatprep.subr.mxu0 0.0
    %2300 = vmatpush2.msra.mxu0 0.0
    %2301 = vmatprep.subr.mxu0 0.0
    %2302 = vmatpush2.msra.mxu0 0.0
    %2303 = vmatprep.subr.mxu0 0.0
    %2304 = vmatpush2.msra.mxu0 0.0
    %2305 = vmatprep.subr.mxu0 0.0
    %2306 = vmatpush2.msra.mxu0 0.0
    %2307 = vmatprep.subr.mxu0 0.0
    %2308 = vmatpush2.msra.mxu0 0.0
    %2309 = vmatprep.subr.mxu0 0.0
    %2310 = vmatpush2.msra.mxu0 0.0
    %2311 = vmatprep.subr.mxu0 0.0
    %2312 = vmatpush2.msra.mxu0 0.0
    %2313 = vmatprep.subr.mxu0 0.0
    %2314 = vmatpush2.msra.mxu0 0.0
    %2315 = vmatprep.subr.mxu0 0.0
    %2316 = vmatpush2.msra.mxu0 0.0
    %2317 = vmatprep.subr.mxu0 0.0
    %2318 = vmatpush2.msra.mxu0 0.0
    %2319 = vmatprep.subr.mxu0 0.0
    %2320 = vmatpush2.msra.mxu0 0.0
    %2321 = vmatprep.mubr.f32.mxu0 0.0
    %2322 = vmatmul.mubr.f32.gmra.mxu0 %v2255
    %v2323 = vpop.f32.mrf.mxu0
    %v2324 = vadd.f32 0.0, %v2323
    %v2325 = vpop.f32.mrf.mxu0
    %2326 = vdwg.mxu0
    %v2327 = vadd.f32 %v2249, %v2324
    %v2328 = vxor.u32 %v2327, 2147483648
    %v2329 = vmul.f32 %v2328, 1.442695
    %v2330 = vpow.pop %v2329
    %v2331 = vadd.f32 %v2330, 1.0
    %v2332 = vrcp.pop %v2331
    %v2333 = vmul.f32 1.0, %v2332
    %v2334 = vtanh.pop %v2327
    %v2335 = vmul.f32 %v2333, %v2068
    %2337 = vrot.lane.b32.xlu0 %v2334, 64
    %v2338 = vpop.permute.xlu0 %2337
    %v2340 = vmul.f32 %v2333, %v2338
    %2342 = vrot.lane.b32.xlu0 %v2340, 32
    %v2343 = vpop.permute.xlu0 %2342
    %v2345 = vadd.f32 %v2335, %v2343
    %v2346 = vtanh.pop %v2345
    %2348 = vrot.lane.b32.xlu0 %v2346, 64
    %v2349 = vpop.permute.xlu0 %2348
    %v2351 = vmul.f32 %v2333, %v2349
    %2352 = vrot.lane.b32.xlu0 %v2175, 32
    %v2353 = vpop.permute.xlu0 %2352
    %vm2355 = vcmask 260102
    %2356 = vst.msk [vmem:[#allocation2 - $0x6] sm:$0x40] %vm2355, %v2353
    %2357 = vrot.lane.b32.xlu0 %v2175, 64
    %v2358 = vpop.permute.xlu0 %2357
    %vm2360 = vcmask 523527
    %2361 = vst.msk [vmem:[#allocation2 - $0x7] sm:$0x80] %vm2360, %v2358
    %2363 = vrot.lane.b32.xlu0 %v2351, 32
    %v2364 = vpop.permute.xlu0 %2363
    %vm2366 = vcmask 253952
    %2367 = vst.msk [vmem:[#allocation2 + $0x1] sm:$0x1] %vm2366, %v2364
    %2368 = vrot.lane.b32.xlu0 %v2351, 64
    %v2369 = vpop.permute.xlu0 %2368
    %vm2371 = vcmask 517377
    %2372 = vst.msk [vmem:[#allocation2] sm:$0x2] %vm2371, %v2369
    %v2373 = vld [vmem:[#allocation2] sm:$0x3]
    %v2374 = vld [vmem:[%s7] sm:$0xff]
    %v2375 = vld [vmem:[%s7 + $0x8] sm:$0xff]
    %v2376 = vld [vmem:[%s7 + $0x10] sm:$0xff]
    %v2377 = vld [vmem:[%s7 + $0x18] sm:$0xff]
    %v2378 = vld [vmem:[%s7 + $0x20] sm:$0xff]
    %v2379 = vld [vmem:[%s7 + $0x28] sm:$0xff]
    %v2380 = vld [vmem:[%s7 + $0x30] sm:$0xff]
    %v2381 = vld [vmem:[%s7 + $0x38] sm:$0xff]
    %v2382 = vld [vmem:[%s7 + $0x40] sm:$0xff]
    %v2383 = vld [vmem:[%s7 + $0x48] sm:$0xff]
    %v2384 = vld [vmem:[%s7 + $0x50] sm:$0xff]
    %v2385 = vld [vmem:[%s7 + $0x58] sm:$0xff]
    %v2386 = vld [vmem:[%s7 + $0x60] sm:$0xff]
    %v2387 = vld [vmem:[%s7 + $0x68] sm:$0xff]
    %v2388 = vld [vmem:[%s7 + $0x70] sm:$0xff]
    %v2389 = vld [vmem:[%s7 + $0x78] sm:$0xff]
    %v2390 = vadd.f32 %v2374, %v2382
    %v2391 = vadd.f32 %v2375, %v2383
    %v2392 = vadd.f32 %v2376, %v2384
    %v2393 = vadd.f32 %v2377, %v2385
    %v2394 = vadd.f32 %v2378, %v2386
    %v2395 = vadd.f32 %v2379, %v2387
    %v2396 = vadd.f32 %v2380, %v2388
    %v2397 = vadd.f32 %v2381, %v2389
    %v2398 = vld [vmem:[%s8] sm:$0x1]
    %v2400 = vlaneseq
    %v2401 = vshrl.u32 %v2400, 7
    %v2402 = vsub.s32 0, %v2401
    %v2403 = vrot.slane %v2398, %v2402
    %vm2405 = vcmask 523264
    %v2407 = vsel %vm2405, %v2373, 0
    %2409 = vmatprep.subr.mxu0 0.0
    %2410 = vmatpush1.msra.mxu0 0.0
    %2411 = vmatprep.subr.mxu0 0.0
    %2412 = vmatpush1.msra.mxu0 0.0
    %2413 = vmatprep.subr.mxu0 0.0
    %2414 = vmatpush1.msra.mxu0 0.0
    %2415 = vmatprep.subr.mxu0 0.0
    %2416 = vmatpush1.msra.mxu0 0.0
    %2417 = vmatprep.subr.mxu0 0.0
    %2418 = vmatpush1.msra.mxu0 0.0
    %2419 = vmatprep.subr.mxu0 0.0
    %2420 = vmatpush1.msra.mxu0 0.0
    %2421 = vmatprep.subr.mxu0 0.0
    %2422 = vmatpush1.msra.mxu0 0.0
    %2423 = vmatprep.subr.mxu0 0.0
    %2424 = vmatpush1.msra.mxu0 0.0
    %2425 = vmatprep.subr.mxu0 0.0
    %2426 = vmatpush1.msra.mxu0 %v2397
    %2427 = vmatprep.subr.mxu0 0.0
    %2428 = vmatpush1.msra.mxu0 %v2396
    %2429 = vmatprep.subr.mxu0 0.0
    %2430 = vmatpush1.msra.mxu0 %v2395
    %2431 = vmatprep.subr.mxu0 0.0
    %2432 = vmatpush1.msra.mxu0 %v2394
    %2433 = vmatprep.subr.mxu0 0.0
    %2434 = vmatpush1.msra.mxu0 %v2393
    %2435 = vmatprep.subr.mxu0 0.0
    %2436 = vmatpush1.msra.mxu0 %v2392
    %2437 = vmatprep.subr.mxu0 0.0
    %2438 = vmatpush1.msra.mxu0 %v2391
    %2439 = vmatprep.subr.mxu0 0.0
    %2440 = vmatpush1.msra.mxu0 %v2390
    %2441 = vmatprep.subr.mxu0 0.0
    %2442 = vmatpush2.msra.mxu0 0.0
    %2443 = vmatprep.subr.mxu0 0.0
    %2444 = vmatpush2.msra.mxu0 0.0
    %2445 = vmatprep.subr.mxu0 0.0
    %2446 = vmatpush2.msra.mxu0 0.0
    %2447 = vmatprep.subr.mxu0 0.0
    %2448 = vmatpush2.msra.mxu0 0.0
    %2449 = vmatprep.subr.mxu0 0.0
    %2450 = vmatpush2.msra.mxu0 0.0
    %2451 = vmatprep.subr.mxu0 0.0
    %2452 = vmatpush2.msra.mxu0 0.0
    %2453 = vmatprep.subr.mxu0 0.0
    %2454 = vmatpush2.msra.mxu0 0.0
    %2455 = vmatprep.subr.mxu0 0.0
    %2456 = vmatpush2.msra.mxu0 0.0
    %2457 = vmatprep.subr.mxu0 0.0
    %2458 = vmatpush2.msra.mxu0 0.0
    %2459 = vmatprep.subr.mxu0 0.0
    %2460 = vmatpush2.msra.mxu0 0.0
    %2461 = vmatprep.subr.mxu0 0.0
    %2462 = vmatpush2.msra.mxu0 0.0
    %2463 = vmatprep.subr.mxu0 0.0
    %2464 = vmatpush2.msra.mxu0 0.0
    %2465 = vmatprep.subr.mxu0 0.0
    %2466 = vmatpush2.msra.mxu0 0.0
    %2467 = vmatprep.subr.mxu0 0.0
    %2468 = vmatpush2.msra.mxu0 0.0
    %2469 = vmatprep.subr.mxu0 0.0
    %2470 = vmatpush2.msra.mxu0 0.0
    %2471 = vmatprep.subr.mxu0 0.0
    %2472 = vmatpush2.msra.mxu0 0.0
    %2473 = vmatprep.mubr.f32.mxu0 0.0
    %2474 = vmatmul.mubr.f32.gmra.mxu0 %v2407
    %v2475 = vpop.f32.mrf.mxu0
    %v2476 = vadd.f32 %v2403, %v2475
    %v2477 = vpop.f32.mrf.mxu0
    %2478 = vdwg.mxu0
    %vm2479 = vcmask 17408
    %2480 = vst.msk [vmem:[#allocation3] sm:$0x3] %vm2479, %v2476
    // Predicated region
    $region38: #{parameter_estimator_forward.1} parent=1 // pred_check
      _
    $region39: #{parameter_estimator_forward.1} parent=1 // pred_check_branch
      %2482 = sbr.rel (0) target = $region41
    $region40: #{parameter_estimator_forward.1} parent=1 // pred_region
      %s2484 = ssub.s32 32, 32
      %2485 = vsyncadd [#allocation4], %s2484
      %s2487 = sshll.u32 [#allocation3], 4
      %s2488 = int_to_ptr.vmem [resolvable:$true] %s2487
      %2490 = dma.vmem_to_hbm [thread:$0]  %s2488, 32, %s9, [#allocation4]
    $region41: #{parameter_estimator_forward.1} parent=1 // pred_fallthru
      _
    // Predicated region
    $region42: #{parameter_estimator_forward.1} parent=1 // pred_check
      _
    $region43: #{parameter_estimator_forward.1} parent=1 // pred_check_branch
      %2492 = sbr.rel (0) target = $region45
    $region44: #{parameter_estimator_forward.1} parent=1 // pred_region
      %2493 = dma.done [#allocation4], 32
    $region45: #{parameter_estimator_forward.1} parent=1 // pred_fallthru
      _
    %2494 = vsyncpa [#allocation4], 1

</llo_original>
